<compile_context>
chip_gen: v7x
topology: tpu7x:2x2x1
jax: 0.10.0
libtpu: 0.0.40
codegen_flags: <defaults>
</compile_context>

<pallas_src>
import jax
import jax.numpy as jnp
from jax.experimental import pallas as pl
from jax.experimental.pallas import tpu as pltpu

INPUT_SIZE = 28 * 28          # 784
HIDDEN_SIZE = 128
OUTPUT_SIZE = 10

COMPUTE_DTYPE = jnp.bfloat16  # matmul input dtype (f32 accumulation on MXU)


def _round_up(n, m):
    return ((n + m - 1) // m) * m


def _cores_per_chip():
    """2 TensorCores only on v7x; v5e/v6e have a single TC per chip."""
    try:
        kind = jax.devices()[0].device_kind.lower()
        return 2 if "v7" in kind else 1
    except Exception:  # pragma: no cover - defensive
        return 1


def mlp_kernel(x_ref,
               w1_ref, b1_ref,
               w2_ref, b2_ref,
               w3_ref, b3_ref,
               w4_ref, b4_ref,
               o_ref):
    # Cast the streamed f32 activations to bf16 in-kernel (VALU has slack;
    # avoids a separate XLA pad/cast fusion and a second HBM pass over x).
    x = x_ref[...].astype(COMPUTE_DTYPE)

    # layer1 + relu (bf16 matmul, f32 accumulate / bias / relu)
    h = jnp.dot(x, w1_ref[...], preferred_element_type=jnp.float32)
    h = jnp.maximum(h + b1_ref[...], 0.0)
    # layer2 + relu
    h = jnp.dot(h.astype(COMPUTE_DTYPE), w2_ref[...],
                preferred_element_type=jnp.float32)
    h = jnp.maximum(h + b2_ref[...], 0.0)
    # layer3 + relu
    h = jnp.dot(h.astype(COMPUTE_DTYPE), w3_ref[...],
                preferred_element_type=jnp.float32)
    h = jnp.maximum(h + b3_ref[...], 0.0)
    # layer4 (no activation) -- N = 10 (full output dim); the masked store is
    # negligible since output traffic is 40 B/row on an HBM-bound kernel.
    h = jnp.dot(h.astype(COMPUTE_DTYPE), w4_ref[...],
                preferred_element_type=jnp.float32)
    o_ref[...] = (h + b4_ref[...]).astype(o_ref.dtype)


def mlp_forward(x, params, *, batch_tile=2048):
    """x: (B, 784) float32. params: dict of (in,out) f32 weights, (1,out) f32 biases.

    Returns (B, 10) float32."""
    B = x.shape[0]

    # Batch tile: multiple of 8, no larger than the (rounded-up) batch.
    bt = _round_up(min(batch_tile, _round_up(B, 8)), 8)
    # Only split for multi-core chips (v7x); on single-TC chips a second grid
    # step is pure fixed overhead.
    if _cores_per_chip() >= 2 and pl.cdiv(B, bt) < 2 and bt >= 16:
        bt = _round_up(max(bt // 2, 8), 8)
    grid = (pl.cdiv(B, bt),)   # ragged last block handled by Pallas (masked writes)

    # Weights: bf16 (tiny, VMEM-resident via constant index_maps). Biases f32.
    w1 = params["w1"].astype(COMPUTE_DTYPE)
    w2 = params["w2"].astype(COMPUTE_DTYPE)
    w3 = params["w3"].astype(COMPUTE_DTYPE)
    w4 = params["w4"].astype(COMPUTE_DTYPE)
    b1, b2, b3, b4 = params["b1"], params["b2"], params["b3"], params["b4"]

    def full(shape):
        nd = len(shape)
        return pl.BlockSpec(shape, lambda i, _nd=nd: (0,) * _nd)

    # Advisory cost estimate on real (unpadded) dims; weights counted once
    # since they stay resident across the grid.
    flops = 2 * B * (INPUT_SIZE * HIDDEN_SIZE
                     + HIDDEN_SIZE * HIDDEN_SIZE
                     + HIDDEN_SIZE * HIDDEN_SIZE
                     + HIDDEN_SIZE * OUTPUT_SIZE)
    weight_bytes = 2 * (w1.size + w2.size + w3.size + w4.size) \
        + 4 * (b1.size + b2.size + b3.size + b4.size)
    bytes_accessed = 4 * x.size + weight_bytes + 4 * B * OUTPUT_SIZE

    # VMEM: double-buffered f32 x tile dominates at large bt; raise the scoped
    # limit only when the estimate exceeds the conservative default.
    vmem_need = int(2 * bt * INPUT_SIZE * 4        # x tile, double-buffered, f32
                    + 2 * bt * OUTPUT_SIZE * 4     # out tile, double-buffered
                    + 4 * bt * HIDDEN_SIZE * 4     # f32 intermediates
                    + 2 * weight_bytes             # resident weights (+slack)
                    + (1 << 20))
    vmem_limit = None
    if vmem_need > 16 * 1024 * 1024:
        vmem_limit = min(vmem_need, 64 * 1024 * 1024)

    out = pl.pallas_call(
        mlp_kernel,
        out_shape=jax.ShapeDtypeStruct((B, OUTPUT_SIZE), jnp.float32),
        grid_spec=pltpu.PrefetchScalarGridSpec(
            num_scalar_prefetch=0,
            grid=grid,
            in_specs=[
                # 784 == full array dim -> legal last-dim; x streamed as f32.
                pl.BlockSpec((bt, INPUT_SIZE), lambda i: (i, 0)),
                full(w1.shape), full(b1.shape),
                full(w2.shape), full(b2.shape),
                full(w3.shape), full(b3.shape),
                full(w4.shape), full(b4.shape),
            ],
            # 10 == full array dim -> legal last-dim; no padded output / slice.
            out_specs=pl.BlockSpec((bt, OUTPUT_SIZE), lambda i: (i, 0)),
        ),
        compiler_params=pltpu.CompilerParams(
            dimension_semantics=("parallel",),
            vmem_limit_bytes=vmem_limit),
        cost_estimate=pl.CostEstimate(
            flops=int(flops), transcendentals=0,
            bytes_accessed=int(bytes_accessed)),
    )(x, w1, b1, w2, b2, w3, b3, w4, b4)

    return out


def init_params(key):
    """Deterministic init mimicking nn.Linear's uniform(-1/sqrt(in), 1/sqrt(in)).

    Weights are stored transposed: (in_features, out_features)."""
    dims = [(INPUT_SIZE, HIDDEN_SIZE),
            (HIDDEN_SIZE, HIDDEN_SIZE),
            (HIDDEN_SIZE, HIDDEN_SIZE),
            (HIDDEN_SIZE, OUTPUT_SIZE)]
    params = {}
    for idx, (fan_in, fan_out) in enumerate(dims, start=1):
        key, kw, kb = jax.random.split(key, 3)
        bound = 1.0 / jnp.sqrt(fan_in)
        params[f"w{idx}"] = jax.random.uniform(
            kw, (fan_in, fan_out), jnp.float32, -bound, bound)
        params[f"b{idx}"] = jax.random.uniform(
            kb, (1, fan_out), jnp.float32, -bound, bound)
    return params


def mlp_reference(x, params, compute_dtype=COMPUTE_DTYPE):
    """Reference with the same bf16-in / f32-accumulate numerics as the kernel."""
    def dense(h, w, b, relu):
        y = jnp.dot(h.astype(compute_dtype), w.astype(compute_dtype),
                    preferred_element_type=jnp.float32) + b
        return jnp.maximum(y, 0.0) if relu else y
    h = dense(x, params["w1"], params["b1"], True)
    h = dense(h, params["w2"], params["b2"], True)
    h = dense(h, params["w3"], params["b3"], True)
    return dense(h, params["w4"], params["b4"], False)


if __name__ == "__main__":
    key = jax.random.PRNGKey(0)
    key, kx = jax.random.split(key)

    batch = 256
    x = jax.random.normal(kx, (batch, INPUT_SIZE), jnp.float32)
    params = init_params(key)

    # Small demo batch: 128-row tiles -> 2 grid steps. Production default is
    # batch_tile=2048 for large batches (HBM-bound; big tiles amortize the
    # ~0.35 us/step overhead and lengthen DMA bursts).
    out = mlp_forward(x, params, batch_tile=128)
    out = jax.block_until_ready(out)

    ref = mlp_reference(x, params)
    assert out.shape == (batch, OUTPUT_SIZE)
    assert jnp.allclose(out, ref, atol=2e-2, rtol=2e-2), \
        float(jnp.max(jnp.abs(out - ref)))

    print("KERNEL_OK")
</pallas_src>

<mosaic_0001>
module attributes {stable_mosaic.version = 11 : i64} {
  func.func @mlp_kernel(%arg0: i32, %arg1: memref<128x784xf32, #tpu.memory_space<vmem>>, %arg2: memref<784x128xbf16, #tpu.memory_space<vmem>>, %arg3: memref<1x128xf32, #tpu.memory_space<vmem>>, %arg4: memref<128x128xbf16, #tpu.memory_space<vmem>>, %arg5: memref<1x128xf32, #tpu.memory_space<vmem>>, %arg6: memref<128x128xbf16, #tpu.memory_space<vmem>>, %arg7: memref<1x128xf32, #tpu.memory_space<vmem>>, %arg8: memref<128x10xbf16, #tpu.memory_space<vmem>>, %arg9: memref<1x10xf32, #tpu.memory_space<vmem>>, %arg10: memref<128x10xf32, #tpu.memory_space<vmem>>) attributes {dimension_semantics = [#tpu.dimension_semantics<parallel>], iteration_bounds = array<i64: 2>, scalar_prefetch = 0 : i64, scratch_operands = 0 : i64, tpu.core_type = #tpu.core_type<tc>, window_params = [{transform_indices = @transform_0, window_bounds = array<i64: 128, 784>}, {pipeline_mode = #tpu.pipeline_mode<synchronous>, transform_indices = @transform_1, window_bounds = array<i64: 784, 128>}, {pipeline_mode = #tpu.pipeline_mode<synchronous>, transform_indices = @transform_2, window_bounds = array<i64: 1, 128>}, {pipeline_mode = #tpu.pipeline_mode<synchronous>, transform_indices = @transform_3, window_bounds = array<i64: 128, 128>}, {pipeline_mode = #tpu.pipeline_mode<synchronous>, transform_indices = @transform_4, window_bounds = array<i64: 1, 128>}, {pipeline_mode = #tpu.pipeline_mode<synchronous>, transform_indices = @transform_5, window_bounds = array<i64: 128, 128>}, {pipeline_mode = #tpu.pipeline_mode<synchronous>, transform_indices = @transform_6, window_bounds = array<i64: 1, 128>}, {pipeline_mode = #tpu.pipeline_mode<synchronous>, transform_indices = @transform_7, window_bounds = array<i64: 128, 10>}, {pipeline_mode = #tpu.pipeline_mode<synchronous>, transform_indices = @transform_8, window_bounds = array<i64: 1, 10>}, {transform_indices = @transform_9, window_bounds = array<i64: 128, 10>}]} {
    %c0 = arith.constant 0 : index
    %c0_0 = arith.constant 0 : index
    %0 = vector.load %arg1[%c0, %c0_0] : memref<128x784xf32, #tpu.memory_space<vmem>>, vector<128x784xf32>
    %1 = arith.truncf %0 : vector<128x784xf32> to vector<128x784xbf16>
    %c0_1 = arith.constant 0 : index
    %c0_2 = arith.constant 0 : index
    %2 = vector.load %arg2[%c0_1, %c0_2] : memref<784x128xbf16, #tpu.memory_space<vmem>>, vector<784x128xbf16>
    %cst = arith.constant dense<0.000000e+00> : vector<128x128xf32>
    %3 = tpu.matmul %1, %2, %cst {dimension_numbers = #tpu.dot_dimension_numbers<[1], [0], [0], [1], [0, 0, 1, 1], [], []>} : vector<128x784xbf16>, vector<784x128xbf16>, vector<128x128xf32> -> vector<128x128xf32>
    %c0_3 = arith.constant 0 : index
    %c0_4 = arith.constant 0 : index
    %4 = vector.load %arg3[%c0_3, %c0_4] : memref<1x128xf32, #tpu.memory_space<vmem>>, vector<1x128xf32>
    %5 = vector.broadcast %4 : vector<1x128xf32> to vector<128x128xf32>
    %6 = arith.addf %3, %5 : vector<128x128xf32>
    %cst_5 = arith.constant 0.000000e+00 : f32
    %7 = vector.broadcast %cst_5 : f32 to vector<128x128xf32>
    %8 = arith.maximumf %6, %7 : vector<128x128xf32>
    %9 = arith.truncf %8 : vector<128x128xf32> to vector<128x128xbf16>
    %c0_6 = arith.constant 0 : index
    %c0_7 = arith.constant 0 : index
    %10 = vector.load %arg4[%c0_6, %c0_7] : memref<128x128xbf16, #tpu.memory_space<vmem>>, vector<128x128xbf16>
    %cst_8 = arith.constant dense<0.000000e+00> : vector<128x128xf32>
    %11 = tpu.matmul %9, %10, %cst_8 {dimension_numbers = #tpu.dot_dimension_numbers<[1], [0], [0], [1], [0, 0, 1, 1], [], []>} : vector<128x128xbf16>, vector<128x128xbf16>, vector<128x128xf32> -> vector<128x128xf32>
    %c0_9 = arith.constant 0 : index
    %c0_10 = arith.constant 0 : index
    %12 = vector.load %arg5[%c0_9, %c0_10] : memref<1x128xf32, #tpu.memory_space<vmem>>, vector<1x128xf32>
    %13 = vector.broadcast %12 : vector<1x128xf32> to vector<128x128xf32>
    %14 = arith.addf %11, %13 : vector<128x128xf32>
    %cst_11 = arith.constant 0.000000e+00 : f32
    %15 = vector.broadcast %cst_11 : f32 to vector<128x128xf32>
    %16 = arith.maximumf %14, %15 : vector<128x128xf32>
    %17 = arith.truncf %16 : vector<128x128xf32> to vector<128x128xbf16>
    %c0_12 = arith.constant 0 : index
    %c0_13 = arith.constant 0 : index
    %18 = vector.load %arg6[%c0_12, %c0_13] : memref<128x128xbf16, #tpu.memory_space<vmem>>, vector<128x128xbf16>
    %cst_14 = arith.constant dense<0.000000e+00> : vector<128x128xf32>
    %19 = tpu.matmul %17, %18, %cst_14 {dimension_numbers = #tpu.dot_dimension_numbers<[1], [0], [0], [1], [0, 0, 1, 1], [], []>} : vector<128x128xbf16>, vector<128x128xbf16>, vector<128x128xf32> -> vector<128x128xf32>
    %c0_15 = arith.constant 0 : index
    %c0_16 = arith.constant 0 : index
    %20 = vector.load %arg7[%c0_15, %c0_16] : memref<1x128xf32, #tpu.memory_space<vmem>>, vector<1x128xf32>
    %21 = vector.broadcast %20 : vector<1x128xf32> to vector<128x128xf32>
    %22 = arith.addf %19, %21 : vector<128x128xf32>
    %cst_17 = arith.constant 0.000000e+00 : f32
    %23 = vector.broadcast %cst_17 : f32 to vector<128x128xf32>
    %24 = arith.maximumf %22, %23 : vector<128x128xf32>
    %25 = arith.truncf %24 : vector<128x128xf32> to vector<128x128xbf16>
    %c0_18 = arith.constant 0 : index
    %c0_19 = arith.constant 0 : index
    %26 = vector.load %arg8[%c0_18, %c0_19] : memref<128x10xbf16, #tpu.memory_space<vmem>>, vector<128x10xbf16>
    %cst_20 = arith.constant dense<0.000000e+00> : vector<128x10xf32>
    %27 = tpu.matmul %25, %26, %cst_20 {dimension_numbers = #tpu.dot_dimension_numbers<[1], [0], [0], [1], [0, 0, 1, 1], [], []>} : vector<128x128xbf16>, vector<128x10xbf16>, vector<128x10xf32> -> vector<128x10xf32>
    %c0_21 = arith.constant 0 : index
    %c0_22 = arith.constant 0 : index
    %28 = vector.load %arg9[%c0_21, %c0_22] : memref<1x10xf32, #tpu.memory_space<vmem>>, vector<1x10xf32>
    %29 = vector.broadcast %28 : vector<1x10xf32> to vector<128x10xf32>
    %30 = arith.addf %27, %29 : vector<128x10xf32>
    %c0_23 = arith.constant 0 : index
    %c0_24 = arith.constant 0 : index
    %31 = vector.load %arg10[%c0_23, %c0_24] : memref<128x10xf32, #tpu.memory_space<vmem>>, vector<128x10xf32>
    tpu.vector_store %arg10[%c0_23, %c0_24], %30 {strides = array<i32>} : memref<128x10xf32, #tpu.memory_space<vmem>>, vector<128x10xf32>,
    return
  }
  func.func @transform_0(%arg0: i32) -> (i32, i32) {
    %c0_i32 = arith.constant 0 : i32
    %c0_i32_0 = arith.constant 0 : i32
    return %arg0, %c0_i32 : i32, i32
  }
  func.func @transform_1(%arg0: i32) -> (i32, i32) {
    %c0_i32 = arith.constant 0 : i32
    %c0_i32_0 = arith.constant 0 : i32
    %c0_i32_1 = arith.constant 0 : i32
    return %c0_i32, %c0_i32_0 : i32, i32
  }
  func.func @transform_2(%arg0: i32) -> (i32, i32) {
    %c0_i32 = arith.constant 0 : i32
    %c0_i32_0 = arith.constant 0 : i32
    %c0_i32_1 = arith.constant 0 : i32
    return %c0_i32, %c0_i32_0 : i32, i32
  }
  func.func @transform_3(%arg0: i32) -> (i32, i32) {
    %c0_i32 = arith.constant 0 : i32
    %c0_i32_0 = arith.constant 0 : i32
    %c0_i32_1 = arith.constant 0 : i32
    return %c0_i32, %c0_i32_0 : i32, i32
  }
  func.func @transform_4(%arg0: i32) -> (i32, i32) {
    %c0_i32 = arith.constant 0 : i32
    %c0_i32_0 = arith.constant 0 : i32
    %c0_i32_1 = arith.constant 0 : i32
    return %c0_i32, %c0_i32_0 : i32, i32
  }
  func.func @transform_5(%arg0: i32) -> (i32, i32) {
    %c0_i32 = arith.constant 0 : i32
    %c0_i32_0 = arith.constant 0 : i32
    %c0_i32_1 = arith.constant 0 : i32
    return %c0_i32, %c0_i32_0 : i32, i32
  }
  func.func @transform_6(%arg0: i32) -> (i32, i32) {
    %c0_i32 = arith.constant 0 : i32
    %c0_i32_0 = arith.constant 0 : i32
    %c0_i32_1 = arith.constant 0 : i32
    return %c0_i32, %c0_i32_0 : i32, i32
  }
  func.func @transform_7(%arg0: i32) -> (i32, i32) {
    %c0_i32 = arith.constant 0 : i32
    %c0_i32_0 = arith.constant 0 : i32
    %c0_i32_1 = arith.constant 0 : i32
    return %c0_i32, %c0_i32_0 : i32, i32
  }
  func.func @transform_8(%arg0: i32) -> (i32, i32) {
    %c0_i32 = arith.constant 0 : i32
    %c0_i32_0 = arith.constant 0 : i32
    %c0_i32_1 = arith.constant 0 : i32
    return %c0_i32, %c0_i32_0 : i32, i32
  }
  func.func @transform_9(%arg0: i32) -> (i32, i32) {
    %c0_i32 = arith.constant 0 : i32
    %c0_i32_0 = arith.constant 0 : i32
    return %arg0, %c0_i32 : i32, i32
  }
}

</mosaic_0001>

<llo_original>
// kernel: tpu_custom_call.1
$region0: #{tpu_custom_call.1}
  #allocation0 [shape = 'u32[]', space=smem, size = 0x4, offset = 0x4, fixed_abs, tag = 'smem constant byte address 0x4 - core index']
  #allocation1 [shape = 'u32[144,128]{1,0:T(1,128)}', space=vmem, size = 0x12000, scoped, tag = 'internal scratch']
  %s0 = inlined_call_operand.vmem [shape: f32[256,784], index: 0, kind: input, shape index: {}]
  %s1 = inlined_call_operand.vmem [shape: bf16[784,128], index: 1, kind: input, shape index: {}]
  %s2 = inlined_call_operand.vmem [shape: f32[1,128], index: 2, kind: input, shape index: {}]
  %s3 = inlined_call_operand.vmem [shape: bf16[128,128], index: 3, kind: input, shape index: {}]
  %s4 = inlined_call_operand.vmem [shape: f32[1,128], index: 4, kind: input, shape index: {}]
  %s5 = inlined_call_operand.vmem [shape: bf16[128,128], index: 5, kind: input, shape index: {}]
  %s6 = inlined_call_operand.vmem [shape: f32[1,128], index: 6, kind: input, shape index: {}]
  %s7 = inlined_call_operand.vmem [shape: bf16[128,10], index: 7, kind: input, shape index: {}]
  %s8 = inlined_call_operand.vmem [shape: f32[1,10], index: 8, kind: input, shape index: {}]
  %s9 = inlined_call_operand.vmem [shape: f32[256,10], index: 9, kind: output, shape index: {}]
  %s10 = sld [smem:[#allocation0]]
  $region69: #{tpu_custom_call.1} parent=0
    _
  %s12 = ssub.s32 1, %s10
  %s13 = scalar_select 0, %s12, %s10
  loop: start=0, step=1, limit=4
  $region2: #{tpu_custom_call.1} parent=0 // loop_pre_header
    _
  $region3: #{tpu_custom_call.1} parent=0 // loop_header
    %s15 = sphi 0, %s19
    %p16 = scmp.ge.s32.totalorder %s15, 4
    %s25 = sphi 0, %s27
    %s28 = sphi 0, %s25
    %s29 = sphi 0, %s28
    %s45 = sphi 0, %s29
    %s49 = sphi 0, %s49
    %s51 = sphi 0, %s49
    %s52 = sphi 0, %s51
    %s66 = sphi 0, %s52
    %s70 = sphi 0, %s70
    %s72 = sphi 0, %s70
    %s73 = sphi 0, %s72
    %s87 = sphi 0, %s73
    %s91 = sphi 0, %s91
    %s93 = sphi 0, %s91
    %s94 = sphi 0, %s93
    %s108 = sphi 0, %s94
    %s112 = sphi 0, %s112
    %s114 = sphi 0, %s112
    %s115 = sphi 0, %s114
    %s129 = sphi 0, %s115
    %s133 = sphi 0, %s133
    %s135 = sphi 0, %s133
    %s136 = sphi 0, %s135
    %s150 = sphi 0, %s136
    %s154 = sphi 0, %s154
    %s156 = sphi 0, %s154
    %s157 = sphi 0, %s156
    %s171 = sphi 0, %s157
    %s175 = sphi 0, %s175
    %s177 = sphi 0, %s175
    %s178 = sphi 0, %s177
    %s192 = sphi 0, %s178
    %s196 = sphi 0, %s196
    %s198 = sphi 0, %s196
    %s199 = sphi 0, %s198
    %s213 = sphi 0, %s199
    %s219 = sphi 0, %s221
    %s222 = sphi 0, %s219
    %s223 = sphi 0, %s222
    %s239 = sphi 0, %s223
  $region4: #{tpu_custom_call.1} parent=0 // loop_header_branch
    %18 = sbr.rel (%p16) target = $region8
  $region5: #{tpu_custom_call.1} parent=0 // loop_body
    %s20 = ssub.s32 %s15, 1
    %s21 = ssub.s32 %s15, 2
    %s22 = sadd.s32 %s15, 1
    %s23 = ssub.s32 %s15, %s22
    %p24 = scmp.eq.s32.totalorder %s23, 0
    %s26 = sadd.s32 %s25, 1
    %s27 = scalar_select %p24, %s25, %s26
    %p30 = pneg %p24
    %p31 = scmp.eq.s32.totalorder %s15, 1
    %p32 = por %p30, %p31
    %p33 = scmp.ne.s32.totalorder %s25, %s28
    %p34 = scmp.eq.s32.totalorder %s15, 0
    %p35 = por %p33, %p34
    %p36 = scmp.ne.s32.totalorder %s25, %s28
    %p37 = scmp.eq.s32.totalorder %s20, 1
    %p38 = por %p36, %p37
    %p39 = scmp.ne.s32.totalorder %s28, %s29
    %p40 = scmp.eq.s32.totalorder %s20, 0
    %p41 = por %p39, %p40
    %p42 = scmp.ne.s32.totalorder %s28, %s29
    %p43 = scmp.eq.s32.totalorder %s21, 1
    %p44 = por %p42, %p43
    %p46 = scmp.ne.s32.totalorder %s29, %s45
    %p47 = scmp.eq.s32.totalorder %s21, 0
    %p48 = por %p46, %p47
    %s50 = sadd.s32 %s49, 1
    %p53 = scmp.eq.s32.totalorder %s15, 1
    %p54 = scmp.ne.s32.totalorder %s49, %s51
    %p55 = scmp.eq.s32.totalorder %s15, 0
    %p56 = por %p54, %p55
    %p57 = scmp.ne.s32.totalorder %s49, %s51
    %p58 = scmp.eq.s32.totalorder %s20, 1
    %p59 = por %p57, %p58
    %p60 = scmp.ne.s32.totalorder %s51, %s52
    %p61 = scmp.eq.s32.totalorder %s20, 0
    %p62 = por %p60, %p61
    %p63 = scmp.ne.s32.totalorder %s51, %s52
    %p64 = scmp.eq.s32.totalorder %s21, 1
    %p65 = por %p63, %p64
    %p67 = scmp.ne.s32.totalorder %s52, %s66
    %p68 = scmp.eq.s32.totalorder %s21, 0
    %p69 = por %p67, %p68
    %s71 = sadd.s32 %s70, 1
    %p74 = scmp.eq.s32.totalorder %s15, 1
    %p75 = scmp.ne.s32.totalorder %s70, %s72
    %p76 = scmp.eq.s32.totalorder %s15, 0
    %p77 = por %p75, %p76
    %p78 = scmp.ne.s32.totalorder %s70, %s72
    %p79 = scmp.eq.s32.totalorder %s20, 1
    %p80 = por %p78, %p79
    %p81 = scmp.ne.s32.totalorder %s72, %s73
    %p82 = scmp.eq.s32.totalorder %s20, 0
    %p83 = por %p81, %p82
    %p84 = scmp.ne.s32.totalorder %s72, %s73
    %p85 = scmp.eq.s32.totalorder %s21, 1
    %p86 = por %p84, %p85
    %p88 = scmp.ne.s32.totalorder %s73, %s87
    %p89 = scmp.eq.s32.totalorder %s21, 0
    %p90 = por %p88, %p89
    %s92 = sadd.s32 %s91, 1
    %p95 = scmp.eq.s32.totalorder %s15, 1
    %p96 = scmp.ne.s32.totalorder %s91, %s93
    %p97 = scmp.eq.s32.totalorder %s15, 0
    %p98 = por %p96, %p97
    %p99 = scmp.ne.s32.totalorder %s91, %s93
    %p100 = scmp.eq.s32.totalorder %s20, 1
    %p101 = por %p99, %p100
    %p102 = scmp.ne.s32.totalorder %s93, %s94
    %p103 = scmp.eq.s32.totalorder %s20, 0
    %p104 = por %p102, %p103
    %p105 = scmp.ne.s32.totalorder %s93, %s94
    %p106 = scmp.eq.s32.totalorder %s21, 1
    %p107 = por %p105, %p106
    %p109 = scmp.ne.s32.totalorder %s94, %s108
    %p110 = scmp.eq.s32.totalorder %s21, 0
    %p111 = por %p109, %p110
    %s113 = sadd.s32 %s112, 1
    %p116 = scmp.eq.s32.totalorder %s15, 1
    %p117 = scmp.ne.s32.totalorder %s112, %s114
    %p118 = scmp.eq.s32.totalorder %s15, 0
    %p119 = por %p117, %p118
    %p120 = scmp.ne.s32.totalorder %s112, %s114
    %p121 = scmp.eq.s32.totalorder %s20, 1
    %p122 = por %p120, %p121
    %p123 = scmp.ne.s32.totalorder %s114, %s115
    %p124 = scmp.eq.s32.totalorder %s20, 0
    %p125 = por %p123, %p124
    %p126 = scmp.ne.s32.totalorder %s114, %s115
    %p127 = scmp.eq.s32.totalorder %s21, 1
    %p128 = por %p126, %p127
    %p130 = scmp.ne.s32.totalorder %s115, %s129
    %p131 = scmp.eq.s32.totalorder %s21, 0
    %p132 = por %p130, %p131
    %s134 = sadd.s32 %s133, 1
    %p137 = scmp.eq.s32.totalorder %s15, 1
    %p138 = scmp.ne.s32.totalorder %s133, %s135
    %p139 = scmp.eq.s32.totalorder %s15, 0
    %p140 = por %p138, %p139
    %p141 = scmp.ne.s32.totalorder %s133, %s135
    %p142 = scmp.eq.s32.totalorder %s20, 1
    %p143 = por %p141, %p142
    %p144 = scmp.ne.s32.totalorder %s135, %s136
    %p145 = scmp.eq.s32.totalorder %s20, 0
    %p146 = por %p144, %p145
    %p147 = scmp.ne.s32.totalorder %s135, %s136
    %p148 = scmp.eq.s32.totalorder %s21, 1
    %p149 = por %p147, %p148
    %p151 = scmp.ne.s32.totalorder %s136, %s150
    %p152 = scmp.eq.s32.totalorder %s21, 0
    %p153 = por %p151, %p152
    %s155 = sadd.s32 %s154, 1
    %p158 = scmp.eq.s32.totalorder %s15, 1
    %p159 = scmp.ne.s32.totalorder %s154, %s156
    %p160 = scmp.eq.s32.totalorder %s15, 0
    %p161 = por %p159, %p160
    %p162 = scmp.ne.s32.totalorder %s154, %s156
    %p163 = scmp.eq.s32.totalorder %s20, 1
    %p164 = por %p162, %p163
    %p165 = scmp.ne.s32.totalorder %s156, %s157
    %p166 = scmp.eq.s32.totalorder %s20, 0
    %p167 = por %p165, %p166
    %p168 = scmp.ne.s32.totalorder %s156, %s157
    %p169 = scmp.eq.s32.totalorder %s21, 1
    %p170 = por %p168, %p169
    %p172 = scmp.ne.s32.totalorder %s157, %s171
    %p173 = scmp.eq.s32.totalorder %s21, 0
    %p174 = por %p172, %p173
    %s176 = sadd.s32 %s175, 1
    %p179 = scmp.eq.s32.totalorder %s15, 1
    %p180 = scmp.ne.s32.totalorder %s175, %s177
    %p181 = scmp.eq.s32.totalorder %s15, 0
    %p182 = por %p180, %p181
    %p183 = scmp.ne.s32.totalorder %s175, %s177
    %p184 = scmp.eq.s32.totalorder %s20, 1
    %p185 = por %p183, %p184
    %p186 = scmp.ne.s32.totalorder %s177, %s178
    %p187 = scmp.eq.s32.totalorder %s20, 0
    %p188 = por %p186, %p187
    %p189 = scmp.ne.s32.totalorder %s177, %s178
    %p190 = scmp.eq.s32.totalorder %s21, 1
    %p191 = por %p189, %p190
    %p193 = scmp.ne.s32.totalorder %s178, %s192
    %p194 = scmp.eq.s32.totalorder %s21, 0
    %p195 = por %p193, %p194
    %s197 = sadd.s32 %s196, 1
    %p200 = scmp.eq.s32.totalorder %s15, 1
    %p201 = scmp.ne.s32.totalorder %s196, %s198
    %p202 = scmp.eq.s32.totalorder %s15, 0
    %p203 = por %p201, %p202
    %p204 = scmp.ne.s32.totalorder %s196, %s198
    %p205 = scmp.eq.s32.totalorder %s20, 1
    %p206 = por %p204, %p205
    %p207 = scmp.ne.s32.totalorder %s198, %s199
    %p208 = scmp.eq.s32.totalorder %s20, 0
    %p209 = por %p207, %p208
    %p210 = scmp.ne.s32.totalorder %s198, %s199
    %p211 = scmp.eq.s32.totalorder %s21, 1
    %p212 = por %p210, %p211
    %p214 = scmp.ne.s32.totalorder %s199, %s213
    %p215 = scmp.eq.s32.totalorder %s21, 0
    %p216 = por %p214, %p215
    %s217 = ssub.s32 %s15, %s22
    %p218 = scmp.eq.s32.totalorder %s217, 0
    %s220 = sadd.s32 %s219, 1
    %s221 = scalar_select %p218, %s219, %s220
    %p224 = pneg %p218
    %p225 = scmp.eq.s32.totalorder %s15, 1
    %p226 = por %p224, %p225
    %p227 = scmp.ne.s32.totalorder %s219, %s222
    %p228 = scmp.eq.s32.totalorder %s15, 0
    %p229 = por %p227, %p228
    %p230 = scmp.ne.s32.totalorder %s219, %s222
    %p231 = scmp.eq.s32.totalorder %s20, 1
    %p232 = por %p230, %p231
    %p233 = scmp.ne.s32.totalorder %s222, %s223
    %p234 = scmp.eq.s32.totalorder %s20, 0
    %p235 = por %p233, %p234
    %p236 = scmp.ne.s32.totalorder %s222, %s223
    %p237 = scmp.eq.s32.totalorder %s21, 1
    %p238 = por %p236, %p237
    %p240 = scmp.ne.s32.totalorder %s223, %s239
    %p241 = scmp.eq.s32.totalorder %s21, 0
    %p242 = por %p240, %p241
    %p243 = scmp.le.s32.totalorder 1, %s15
    %p244 = scmp.lt.s32.totalorder %s15, 3
    %p245 = pnand %p243, %p244
    %p246 = pneg %p245
    // Predicated region
    $region9: #{tpu_custom_call.1} parent=5 // pred_check
      _
    $region10: #{tpu_custom_call.1} parent=5 // pred_check_branch
      %248 = sbr.rel (%p245) target = $region12
    $region11: #{tpu_custom_call.1} parent=5 // pred_region
      %s249 = ssub.s32 %s15, 1
      // Predicated region
      $region13: #{tpu_custom_call.1} parent=11 // pred_check
        %p250 = pneg %p62
      $region14: #{tpu_custom_call.1} parent=11 // pred_check_branch
        %252 = sbr.rel (%p250) target = $region16
      $region15: #{tpu_custom_call.1} parent=11 // pred_region
        _
      $region16: #{tpu_custom_call.1} parent=11 // pred_fallthru
        _
      // Predicated region
      $region17: #{tpu_custom_call.1} parent=11 // pred_check
        %p253 = pneg %p83
      $region18: #{tpu_custom_call.1} parent=11 // pred_check_branch
        %255 = sbr.rel (%p253) target = $region20
      $region19: #{tpu_custom_call.1} parent=11 // pred_region
        _
      $region20: #{tpu_custom_call.1} parent=11 // pred_fallthru
        _
      // Predicated region
      $region21: #{tpu_custom_call.1} parent=11 // pred_check
        %p256 = pneg %p104
      $region22: #{tpu_custom_call.1} parent=11 // pred_check_branch
        %258 = sbr.rel (%p256) target = $region24
      $region23: #{tpu_custom_call.1} parent=11 // pred_region
        _
      $region24: #{tpu_custom_call.1} parent=11 // pred_fallthru
        _
      // Predicated region
      $region25: #{tpu_custom_call.1} parent=11 // pred_check
        %p259 = pneg %p125
      $region26: #{tpu_custom_call.1} parent=11 // pred_check_branch
        %261 = sbr.rel (%p259) target = $region28
      $region27: #{tpu_custom_call.1} parent=11 // pred_region
        _
      $region28: #{tpu_custom_call.1} parent=11 // pred_fallthru
        _
      // Predicated region
      $region29: #{tpu_custom_call.1} parent=11 // pred_check
        %p262 = pneg %p146
      $region30: #{tpu_custom_call.1} parent=11 // pred_check_branch
        %264 = sbr.rel (%p262) target = $region32
      $region31: #{tpu_custom_call.1} parent=11 // pred_region
        _
      $region32: #{tpu_custom_call.1} parent=11 // pred_fallthru
        _
      // Predicated region
      $region33: #{tpu_custom_call.1} parent=11 // pred_check
        %p265 = pneg %p167
      $region34: #{tpu_custom_call.1} parent=11 // pred_check_branch
        %267 = sbr.rel (%p265) target = $region36
      $region35: #{tpu_custom_call.1} parent=11 // pred_region
        _
      $region36: #{tpu_custom_call.1} parent=11 // pred_fallthru
        _
      // Predicated region
      $region37: #{tpu_custom_call.1} parent=11 // pred_check
        %p268 = pneg %p188
      $region38: #{tpu_custom_call.1} parent=11 // pred_check_branch
        %270 = sbr.rel (%p268) target = $region40
      $region39: #{tpu_custom_call.1} parent=11 // pred_region
        _
      $region40: #{tpu_custom_call.1} parent=11 // pred_fallthru
        _
      // Predicated region
      $region41: #{tpu_custom_call.1} parent=11 // pred_check
        %p271 = pneg %p209
      $region42: #{tpu_custom_call.1} parent=11 // pred_check_branch
        %273 = sbr.rel (%p271) target = $region44
      $region43: #{tpu_custom_call.1} parent=11 // pred_region
        _
      $region44: #{tpu_custom_call.1} parent=11 // pred_fallthru
        _
    $region12: #{tpu_custom_call.1} parent=5 // pred_fallthru
      _
    %p274 = scmp.lt.s32.totalorder %s15, 2
    // Predicated region
    $region45: #{tpu_custom_call.1} parent=5 // pred_check
      %p275 = pneg %p274
    $region46: #{tpu_custom_call.1} parent=5 // pred_check_branch
      %277 = sbr.rel (%p275) target = $region48
    $region47: #{tpu_custom_call.1} parent=5 // pred_region
      // Predicated region
      $region49: #{tpu_custom_call.1} parent=47 // pred_check
        %p278 = pneg %p35
      $region50: #{tpu_custom_call.1} parent=47 // pred_check_branch
        %280 = sbr.rel (%p278) target = $region52
      $region51: #{tpu_custom_call.1} parent=47 // pred_region
        %s281 = smul.u32 16, %s15
        %p282 = scmp.lt.s32.totalorder %s281, 31
        %s283 = scalar_select %p282, %s281, 31
        %s284 = smul.addr %s283, 7
        %s285 = smul.addr %s284, 8
        %s286 = scalar_lea.vmem %s0, %s285
        %s287 = smul.u32 16, %s15
      $region52: #{tpu_custom_call.1} parent=47 // pred_fallthru
        _
    $region48: #{tpu_custom_call.1} parent=5 // pred_fallthru
      _
    %p288 = scmp.le.s32.totalorder 1, %s15
    %p289 = scmp.lt.s32.totalorder %s15, 3
    %p290 = pnand %p288, %p289
    %p291 = pneg %p290
    // Predicated region
    $region53: #{tpu_custom_call.1} parent=5 // pred_check
      _
    $region54: #{tpu_custom_call.1} parent=5 // pred_check_branch
      %293 = sbr.rel (%p290) target = $region56
    $region55: #{tpu_custom_call.1} parent=5 // pred_region
      %s294 = ssub.s32 %s15, 1
      %s295 = smul.u32 16, %s20
      %p296 = scmp.lt.s32.totalorder %s295, 31
      %s297 = scalar_select %p296, %s295, 31
      %s298 = smul.addr %s297, 7
      %s299 = smul.addr %s298, 8
      %s300 = scalar_lea.vmem %s0, %s299
      %p301 = pneg %p41
      %p302 = pneg %p38
      %p303 = pneg %p62
      %p304 = pneg %p59
      %p305 = pneg %p83
      %p306 = pneg %p80
      %p307 = pneg %p104
      %p308 = pneg %p101
      %p309 = pneg %p125
      %p310 = pneg %p122
      %p311 = pneg %p146
      %p312 = pneg %p143
      %p313 = pneg %p167
      %p314 = pneg %p164
      %p315 = pneg %p188
      %p316 = pneg %p185
      %p317 = pneg %p209
      %p318 = pneg %p206
      %p319 = pneg %p235
      %p320 = pneg %p232
      %s321 = smul.u32 16, %s20
      %p322 = scmp.lt.s32.totalorder %s321, 31
      %s323 = scalar_select %p322, %s321, 31
      %s324 = smul.addr %s323, 8
      %s325 = scalar_lea.vmem %s9, %s324
      %s326 = smul.u32 16, %s20
      %p327 = scmp.lt.s32.totalorder %s326, 31
      %s328 = scalar_select %p327, %s326, 31
      %s329 = smul.addr %s328, 7
      %s330 = smul.addr %s329, 8
      %s331 = scalar_lea.vmem %s0, %s330
      %s332 = smul.u32 16, %s20
      %s333 = smul.u32 16, %s20
      %p334 = scmp.lt.s32.totalorder %s333, 31
      %s335 = scalar_select %p334, %s333, 31
      %s336 = smul.addr %s335, 8
      %s337 = scalar_lea.vmem %s9, %s336
      %s338 = smul.u32 16, %s20
      %v340 = vld [vmem:[%s331] sm:$0xff]
      %v341 = vld [vmem:[%s331 + $0x8] sm:$0xff]
      %v342 = vld [vmem:[%s331 + $0x10] sm:$0xff]
      %v343 = vld [vmem:[%s331 + $0x18] sm:$0xff]
      %v344 = vld [vmem:[%s331 + $0x20] sm:$0xff]
      %v345 = vld [vmem:[%s331 + $0x28] sm:$0xff]
      %v346 = vld [vmem:[%s331 + $0x30] sm:$0xff]
      %v347 = vld [vmem:[%s331 + $0x38] sm:$0xff]
      %v348 = vld [vmem:[%s331 + $0x40] sm:$0xff]
      %v349 = vld [vmem:[%s331 + $0x48] sm:$0xff]
      %v350 = vld [vmem:[%s331 + $0x50] sm:$0xff]
      %v351 = vld [vmem:[%s331 + $0x58] sm:$0xff]
      %v352 = vld [vmem:[%s331 + $0x60] sm:$0xff]
      %v353 = vld [vmem:[%s331 + $0x68] sm:$0xff]
      %v354 = vld [vmem:[%s331 + $0x70] sm:$0xff]
      %v355 = vld [vmem:[%s331 + $0x78] sm:$0xff]
      %v356 = vld [vmem:[%s331 + $0x80] sm:$0xff]
      %v357 = vld [vmem:[%s331 + $0x88] sm:$0xff]
      %v358 = vld [vmem:[%s331 + $0x90] sm:$0xff]
      %v359 = vld [vmem:[%s331 + $0x98] sm:$0xff]
      %v360 = vld [vmem:[%s331 + $0xa0] sm:$0xff]
      %v361 = vld [vmem:[%s331 + $0xa8] sm:$0xff]
      %v362 = vld [vmem:[%s331 + $0xb0] sm:$0xff]
      %v363 = vld [vmem:[%s331 + $0xb8] sm:$0xff]
      %v364 = vld [vmem:[%s331 + $0xc0] sm:$0xff]
      %v365 = vld [vmem:[%s331 + $0xc8] sm:$0xff]
      %v366 = vld [vmem:[%s331 + $0xd0] sm:$0xff]
      %v367 = vld [vmem:[%s331 + $0xd8] sm:$0xff]
      %v368 = vld [vmem:[%s331 + $0xe0] sm:$0xff]
      %v369 = vld [vmem:[%s331 + $0xe8] sm:$0xff]
      %v370 = vld [vmem:[%s331 + $0xf0] sm:$0xff]
      %v371 = vld [vmem:[%s331 + $0xf8] sm:$0xff]
      %v372 = vld [vmem:[%s331 + $0x100] sm:$0xff]
      %v373 = vld [vmem:[%s331 + $0x108] sm:$0xff]
      %v374 = vld [vmem:[%s331 + $0x110] sm:$0xff]
      %v375 = vld [vmem:[%s331 + $0x118] sm:$0xff]
      %v376 = vld [vmem:[%s331 + $0x120] sm:$0xff]
      %v377 = vld [vmem:[%s331 + $0x128] sm:$0xff]
      %v378 = vld [vmem:[%s331 + $0x130] sm:$0xff]
      %v379 = vld [vmem:[%s331 + $0x138] sm:$0xff]
      %v380 = vld [vmem:[%s331 + $0x140] sm:$0xff]
      %v381 = vld [vmem:[%s331 + $0x148] sm:$0xff]
      %v382 = vld [vmem:[%s331 + $0x150] sm:$0xff]
      %v383 = vld [vmem:[%s331 + $0x158] sm:$0xff]
      %v384 = vld [vmem:[%s331 + $0x160] sm:$0xff]
      %v385 = vld [vmem:[%s331 + $0x168] sm:$0xff]
      %v386 = vld [vmem:[%s331 + $0x170] sm:$0xff]
      %v387 = vld [vmem:[%s331 + $0x178] sm:$0xff]
      %v388 = vld [vmem:[%s331 + $0x180] sm:$0xff]
      %v389 = vld [vmem:[%s331 + $0x188] sm:$0xff]
      %v390 = vld [vmem:[%s331 + $0x190] sm:$0xff]
      %v391 = vld [vmem:[%s331 + $0x198] sm:$0xff]
      %v392 = vld [vmem:[%s331 + $0x1a0] sm:$0xff]
      %v393 = vld [vmem:[%s331 + $0x1a8] sm:$0xff]
      %v394 = vld [vmem:[%s331 + $0x1b0] sm:$0xff]
      %v395 = vld [vmem:[%s331 + $0x1b8] sm:$0xff]
      %v396 = vld [vmem:[%s331 + $0x1c0] sm:$0xff]
      %v397 = vld [vmem:[%s331 + $0x1c8] sm:$0xff]
      %v398 = vld [vmem:[%s331 + $0x1d0] sm:$0xff]
      %v399 = vld [vmem:[%s331 + $0x1d8] sm:$0xff]
      %v400 = vld [vmem:[%s331 + $0x1e0] sm:$0xff]
      %v401 = vld [vmem:[%s331 + $0x1e8] sm:$0xff]
      %v402 = vld [vmem:[%s331 + $0x1f0] sm:$0xff]
      %v403 = vld [vmem:[%s331 + $0x1f8] sm:$0xff]
      %v404 = vld [vmem:[%s331 + $0x200] sm:$0xff]
      %v405 = vld [vmem:[%s331 + $0x208] sm:$0xff]
      %v406 = vld [vmem:[%s331 + $0x210] sm:$0xff]
      %v407 = vld [vmem:[%s331 + $0x218] sm:$0xff]
      %v408 = vld [vmem:[%s331 + $0x220] sm:$0xff]
      %v409 = vld [vmem:[%s331 + $0x228] sm:$0xff]
      %v410 = vld [vmem:[%s331 + $0x230] sm:$0xff]
      %v411 = vld [vmem:[%s331 + $0x238] sm:$0xff]
      %v412 = vld [vmem:[%s331 + $0x240] sm:$0xff]
      %v413 = vld [vmem:[%s331 + $0x248] sm:$0xff]
      %v414 = vld [vmem:[%s331 + $0x250] sm:$0xff]
      %v415 = vld [vmem:[%s331 + $0x258] sm:$0xff]
      %v416 = vld [vmem:[%s331 + $0x260] sm:$0xff]
      %v417 = vld [vmem:[%s331 + $0x268] sm:$0xff]
      %v418 = vld [vmem:[%s331 + $0x270] sm:$0xff]
      %v419 = vld [vmem:[%s331 + $0x278] sm:$0xff]
      %v420 = vld [vmem:[%s331 + $0x280] sm:$0xff]
      %v421 = vld [vmem:[%s331 + $0x288] sm:$0xff]
      %v422 = vld [vmem:[%s331 + $0x290] sm:$0xff]
      %v423 = vld [vmem:[%s331 + $0x298] sm:$0xff]
      %v424 = vld [vmem:[%s331 + $0x2a0] sm:$0xff]
      %v425 = vld [vmem:[%s331 + $0x2a8] sm:$0xff]
      %v426 = vld [vmem:[%s331 + $0x2b0] sm:$0xff]
      %v427 = vld [vmem:[%s331 + $0x2b8] sm:$0xff]
      %v428 = vld [vmem:[%s331 + $0x2c0] sm:$0xff]
      %v429 = vld [vmem:[%s331 + $0x2c8] sm:$0xff]
      %v430 = vld [vmem:[%s331 + $0x2d0] sm:$0xff]
      %v431 = vld [vmem:[%s331 + $0x2d8] sm:$0xff]
      %v432 = vld [vmem:[%s331 + $0x2e0] sm:$0xff]
      %v433 = vld [vmem:[%s331 + $0x2e8] sm:$0xff]
      %v434 = vld [vmem:[%s331 + $0x2f0] sm:$0xff]
      %v435 = vld [vmem:[%s331 + $0x2f8] sm:$0xff]
      %v436 = vld [vmem:[%s331 + $0x300] sm:$0xff]
      %v437 = vld [vmem:[%s331 + $0x308] sm:$0xff]
      %v438 = vld [vmem:[%s331 + $0x310] sm:$0xff]
      %v439 = vld [vmem:[%s331 + $0x318] sm:$0xff]
      %v440 = vld [vmem:[%s331 + $0x320] sm:$0xff]
      %v441 = vld [vmem:[%s331 + $0x328] sm:$0xff]
      %v442 = vld [vmem:[%s331 + $0x330] sm:$0xff]
      %v443 = vld [vmem:[%s331 + $0x338] sm:$0xff]
      %v444 = vld [vmem:[%s331 + $0x340] sm:$0xff]
      %v445 = vld [vmem:[%s331 + $0x348] sm:$0xff]
      %v446 = vld [vmem:[%s331 + $0x350] sm:$0xff]
      %v447 = vld [vmem:[%s331 + $0x358] sm:$0xff]
      %v448 = vld [vmem:[%s331 + $0x360] sm:$0xff]
      %v449 = vld [vmem:[%s331 + $0x368] sm:$0xff]
      %v450 = vld [vmem:[%s331 + $0x370] sm:$0xff]
      %v451 = vld [vmem:[%s331 + $0x378] sm:$0xff]
      %v452 = vpack.c.bf16 %v347, %v340
      %v453 = vpack.c.bf16 %v348, %v341
      %v454 = vpack.c.bf16 %v349, %v342
      %v455 = vpack.c.bf16 %v350, %v343
      %v456 = vpack.c.bf16 %v351, %v344
      %v457 = vpack.c.bf16 %v352, %v345
      %v458 = vpack.c.bf16 %v353, %v346
      %v459 = vpack.c.bf16 %v361, %v354
      %v460 = vpack.c.bf16 %v362, %v355
      %v461 = vpack.c.bf16 %v363, %v356
      %v462 = vpack.c.bf16 %v364, %v357
      %v463 = vpack.c.bf16 %v365, %v358
      %v464 = vpack.c.bf16 %v366, %v359
      %v465 = vpack.c.bf16 %v367, %v360
      %v466 = vpack.c.bf16 %v375, %v368
      %v467 = vpack.c.bf16 %v376, %v369
      %v468 = vpack.c.bf16 %v377, %v370
      %v469 = vpack.c.bf16 %v378, %v371
      %v470 = vpack.c.bf16 %v379, %v372
      %v471 = vpack.c.bf16 %v380, %v373
      %v472 = vpack.c.bf16 %v381, %v374
      %v473 = vpack.c.bf16 %v389, %v382
      %v474 = vpack.c.bf16 %v390, %v383
      %v475 = vpack.c.bf16 %v391, %v384
      %v476 = vpack.c.bf16 %v392, %v385
      %v477 = vpack.c.bf16 %v393, %v386
      %v478 = vpack.c.bf16 %v394, %v387
      %v479 = vpack.c.bf16 %v395, %v388
      %v480 = vpack.c.bf16 %v403, %v396
      %v481 = vpack.c.bf16 %v404, %v397
      %v482 = vpack.c.bf16 %v405, %v398
      %v483 = vpack.c.bf16 %v406, %v399
      %v484 = vpack.c.bf16 %v407, %v400
      %v485 = vpack.c.bf16 %v408, %v401
      %v486 = vpack.c.bf16 %v409, %v402
      %v487 = vpack.c.bf16 %v417, %v410
      %v488 = vpack.c.bf16 %v418, %v411
      %v489 = vpack.c.bf16 %v419, %v412
      %v490 = vpack.c.bf16 %v420, %v413
      %v491 = vpack.c.bf16 %v421, %v414
      %v492 = vpack.c.bf16 %v422, %v415
      %v493 = vpack.c.bf16 %v423, %v416
      %v494 = vpack.c.bf16 %v431, %v424
      %v495 = vpack.c.bf16 %v432, %v425
      %v496 = vpack.c.bf16 %v433, %v426
      %v497 = vpack.c.bf16 %v434, %v427
      %v498 = vpack.c.bf16 %v435, %v428
      %v499 = vpack.c.bf16 %v436, %v429
      %v500 = vpack.c.bf16 %v437, %v430
      %v501 = vpack.c.bf16 %v445, %v438
      %v502 = vpack.c.bf16 %v446, %v439
      %v503 = vpack.c.bf16 %v447, %v440
      %v504 = vpack.c.bf16 %v448, %v441
      %v505 = vpack.c.bf16 %v449, %v442
      %v506 = vpack.c.bf16 %v450, %v443
      %v507 = vpack.c.bf16 %v451, %v444
      %v508 = vld [vmem:[%s1] sm:$0xf]
      %v509 = vld [vmem:[%s1 + $0x4] sm:$0xf]
      %v510 = vld [vmem:[%s1 + $0x8] sm:$0xf]
      %v511 = vld [vmem:[%s1 + $0xc] sm:$0xf]
      %v512 = vld [vmem:[%s1 + $0x10] sm:$0xf]
      %v513 = vld [vmem:[%s1 + $0x14] sm:$0xf]
      %v514 = vld [vmem:[%s1 + $0x18] sm:$0xf]
      %v515 = vld [vmem:[%s1 + $0x1c] sm:$0xf]
      %v516 = vld [vmem:[%s1 + $0x20] sm:$0xf]
      %v517 = vld [vmem:[%s1 + $0x24] sm:$0xf]
      %v518 = vld [vmem:[%s1 + $0x28] sm:$0xf]
      %v519 = vld [vmem:[%s1 + $0x2c] sm:$0xf]
      %v520 = vld [vmem:[%s1 + $0x30] sm:$0xf]
      %v521 = vld [vmem:[%s1 + $0x34] sm:$0xf]
      %v522 = vld [vmem:[%s1 + $0x38] sm:$0xf]
      %v523 = vld [vmem:[%s1 + $0x3c] sm:$0xf]
      %v524 = vld [vmem:[%s1 + $0x40] sm:$0xf]
      %v525 = vld [vmem:[%s1 + $0x44] sm:$0xf]
      %v526 = vld [vmem:[%s1 + $0x48] sm:$0xf]
      %v527 = vld [vmem:[%s1 + $0x4c] sm:$0xf]
      %v528 = vld [vmem:[%s1 + $0x50] sm:$0xf]
      %v529 = vld [vmem:[%s1 + $0x54] sm:$0xf]
      %v530 = vld [vmem:[%s1 + $0x58] sm:$0xf]
      %v531 = vld [vmem:[%s1 + $0x5c] sm:$0xf]
      %v532 = vld [vmem:[%s1 + $0x60] sm:$0xf]
      %v533 = vld [vmem:[%s1 + $0x64] sm:$0xf]
      %v534 = vld [vmem:[%s1 + $0x68] sm:$0xf]
      %v535 = vld [vmem:[%s1 + $0x6c] sm:$0xf]
      %v536 = vld [vmem:[%s1 + $0x70] sm:$0xf]
      %v537 = vld [vmem:[%s1 + $0x74] sm:$0xf]
      %v538 = vld [vmem:[%s1 + $0x78] sm:$0xf]
      %v539 = vld [vmem:[%s1 + $0x7c] sm:$0xf]
      %v540 = vld [vmem:[%s1 + $0x80] sm:$0xf]
      %v541 = vld [vmem:[%s1 + $0x84] sm:$0xf]
      %v542 = vld [vmem:[%s1 + $0x88] sm:$0xf]
      %v543 = vld [vmem:[%s1 + $0x8c] sm:$0xf]
      %v544 = vld [vmem:[%s1 + $0x90] sm:$0xf]
      %v545 = vld [vmem:[%s1 + $0x94] sm:$0xf]
      %v546 = vld [vmem:[%s1 + $0x98] sm:$0xf]
      %v547 = vld [vmem:[%s1 + $0x9c] sm:$0xf]
      %v548 = vld [vmem:[%s1 + $0xa0] sm:$0xf]
      %v549 = vld [vmem:[%s1 + $0xa4] sm:$0xf]
      %v550 = vld [vmem:[%s1 + $0xa8] sm:$0xf]
      %v551 = vld [vmem:[%s1 + $0xac] sm:$0xf]
      %v552 = vld [vmem:[%s1 + $0xb0] sm:$0xf]
      %v553 = vld [vmem:[%s1 + $0xb4] sm:$0xf]
      %v554 = vld [vmem:[%s1 + $0xb8] sm:$0xf]
      %v555 = vld [vmem:[%s1 + $0xbc] sm:$0xf]
      %v556 = vld [vmem:[%s1 + $0xc0] sm:$0xf]
      %v557 = vld [vmem:[%s1 + $0xc4] sm:$0xf]
      %v558 = vld [vmem:[%s1 + $0xc8] sm:$0xf]
      %v559 = vld [vmem:[%s1 + $0xcc] sm:$0xf]
      %v560 = vld [vmem:[%s1 + $0xd0] sm:$0xf]
      %v561 = vld [vmem:[%s1 + $0xd4] sm:$0xf]
      %v562 = vld [vmem:[%s1 + $0xd8] sm:$0xf]
      %v563 = vld [vmem:[%s1 + $0xdc] sm:$0xf]
      %v564 = vld [vmem:[%s1 + $0xe0] sm:$0xf]
      %v565 = vld [vmem:[%s1 + $0xe4] sm:$0xf]
      %v566 = vld [vmem:[%s1 + $0xe8] sm:$0xf]
      %v567 = vld [vmem:[%s1 + $0xec] sm:$0xf]
      %v568 = vld [vmem:[%s1 + $0xf0] sm:$0xf]
      %v569 = vld [vmem:[%s1 + $0xf4] sm:$0xf]
      %v570 = vld [vmem:[%s1 + $0xf8] sm:$0xf]
      %v571 = vld [vmem:[%s1 + $0xfc] sm:$0xf]
      %v572 = vld [vmem:[%s1 + $0x100] sm:$0xf]
      %v573 = vld [vmem:[%s1 + $0x104] sm:$0xf]
      %v574 = vld [vmem:[%s1 + $0x108] sm:$0xf]
      %v575 = vld [vmem:[%s1 + $0x10c] sm:$0xf]
      %v576 = vld [vmem:[%s1 + $0x110] sm:$0xf]
      %v577 = vld [vmem:[%s1 + $0x114] sm:$0xf]
      %v578 = vld [vmem:[%s1 + $0x118] sm:$0xf]
      %v579 = vld [vmem:[%s1 + $0x11c] sm:$0xf]
      %v580 = vld [vmem:[%s1 + $0x120] sm:$0xf]
      %v581 = vld [vmem:[%s1 + $0x124] sm:$0xf]
      %v582 = vld [vmem:[%s1 + $0x128] sm:$0xf]
      %v583 = vld [vmem:[%s1 + $0x12c] sm:$0xf]
      %v584 = vld [vmem:[%s1 + $0x130] sm:$0xf]
      %v585 = vld [vmem:[%s1 + $0x134] sm:$0xf]
      %v586 = vld [vmem:[%s1 + $0x138] sm:$0xf]
      %v587 = vld [vmem:[%s1 + $0x13c] sm:$0xf]
      %v588 = vld [vmem:[%s1 + $0x140] sm:$0xf]
      %v589 = vld [vmem:[%s1 + $0x144] sm:$0xf]
      %v590 = vld [vmem:[%s1 + $0x148] sm:$0xf]
      %v591 = vld [vmem:[%s1 + $0x14c] sm:$0xf]
      %v592 = vld [vmem:[%s1 + $0x150] sm:$0xf]
      %v593 = vld [vmem:[%s1 + $0x154] sm:$0xf]
      %v594 = vld [vmem:[%s1 + $0x158] sm:$0xf]
      %v595 = vld [vmem:[%s1 + $0x15c] sm:$0xf]
      %v596 = vld [vmem:[%s1 + $0x160] sm:$0xf]
      %v597 = vld [vmem:[%s1 + $0x164] sm:$0xf]
      %v598 = vld [vmem:[%s1 + $0x168] sm:$0xf]
      %v599 = vld [vmem:[%s1 + $0x16c] sm:$0xf]
      %v600 = vld [vmem:[%s1 + $0x170] sm:$0xf]
      %v601 = vld [vmem:[%s1 + $0x174] sm:$0xf]
      %v602 = vld [vmem:[%s1 + $0x178] sm:$0xf]
      %v603 = vld [vmem:[%s1 + $0x17c] sm:$0xf]
      %v604 = vld [vmem:[%s1 + $0x180] sm:$0xf]
      %v605 = vld [vmem:[%s1 + $0x184] sm:$0xf]
      %v606 = vld [vmem:[%s2] sm:$0x1]
      %v608 = vlaneseq
      %v609 = vshrl.u32 %v608, 7
      %v610 = vsub.s32 0, %v609
      %v611 = vrot.slane %v606, %v610
      %v711 = vunpack.c.l.b16 %v508
      %v712 = vunpack.c.l.b16 %v509
      %v713 = vunpack.c.l.b16 %v510
      %v714 = vunpack.c.l.b16 %v511
      %v715 = vunpack.c.l.b16 %v512
      %v716 = vunpack.c.l.b16 %v513
      %v717 = vunpack.c.l.b16 %v514
      %v718 = vunpack.c.l.b16 %v515
      %v719 = vunpack.c.l.b16 %v516
      %v720 = vunpack.c.l.b16 %v517
      %v721 = vunpack.c.l.b16 %v518
      %v722 = vunpack.c.l.b16 %v519
      %v723 = vunpack.c.l.b16 %v520
      %v724 = vunpack.c.l.b16 %v521
      %v725 = vunpack.c.l.b16 %v522
      %v726 = vunpack.c.l.b16 %v523
      %v727 = vunpack.c.l.b16 %v524
      %v728 = vunpack.c.l.b16 %v525
      %v729 = vunpack.c.l.b16 %v526
      %v730 = vunpack.c.l.b16 %v527
      %v731 = vunpack.c.l.b16 %v528
      %v732 = vunpack.c.l.b16 %v529
      %v733 = vunpack.c.l.b16 %v530
      %v734 = vunpack.c.l.b16 %v531
      %v735 = vunpack.c.l.b16 %v532
      %v736 = vunpack.c.l.b16 %v533
      %v737 = vunpack.c.l.b16 %v534
      %v738 = vunpack.c.l.b16 %v535
      %v739 = vunpack.c.l.b16 %v536
      %v740 = vunpack.c.l.b16 %v537
      %v741 = vunpack.c.l.b16 %v538
      %v742 = vunpack.c.l.b16 %v539
      %v743 = vunpack.c.l.b16 %v540
      %v744 = vunpack.c.l.b16 %v541
      %v745 = vunpack.c.l.b16 %v542
      %v746 = vunpack.c.l.b16 %v543
      %v747 = vunpack.c.l.b16 %v544
      %v748 = vunpack.c.l.b16 %v545
      %v749 = vunpack.c.l.b16 %v546
      %v750 = vunpack.c.l.b16 %v547
      %v751 = vunpack.c.l.b16 %v548
      %v752 = vunpack.c.l.b16 %v549
      %v753 = vunpack.c.l.b16 %v550
      %v754 = vunpack.c.l.b16 %v551
      %v755 = vunpack.c.l.b16 %v552
      %v756 = vunpack.c.l.b16 %v553
      %v757 = vunpack.c.l.b16 %v554
      %v758 = vunpack.c.l.b16 %v555
      %v759 = vunpack.c.l.b16 %v556
      %v760 = vunpack.c.l.b16 %v557
      %v761 = vunpack.c.l.b16 %v558
      %v762 = vunpack.c.l.b16 %v559
      %v763 = vunpack.c.l.b16 %v560
      %v764 = vunpack.c.l.b16 %v561
      %v765 = vunpack.c.l.b16 %v562
      %v766 = vunpack.c.l.b16 %v563
      %v767 = vunpack.c.l.b16 %v564
      %v768 = vunpack.c.l.b16 %v565
      %v769 = vunpack.c.l.b16 %v566
      %v770 = vunpack.c.l.b16 %v567
      %v771 = vunpack.c.l.b16 %v568
      %v772 = vunpack.c.l.b16 %v569
      %v773 = vunpack.c.l.b16 %v570
      %v774 = vunpack.c.l.b16 %v571
      %v775 = vunpack.c.l.b16 %v572
      %v776 = vunpack.c.l.b16 %v573
      %v777 = vunpack.c.l.b16 %v574
      %v778 = vunpack.c.l.b16 %v575
      %v779 = vunpack.c.l.b16 %v576
      %v780 = vunpack.c.l.b16 %v577
      %v781 = vunpack.c.l.b16 %v578
      %v782 = vunpack.c.l.b16 %v579
      %v783 = vunpack.c.l.b16 %v580
      %v784 = vunpack.c.l.b16 %v581
      %v785 = vunpack.c.l.b16 %v582
      %v786 = vunpack.c.l.b16 %v583
      %v787 = vunpack.c.l.b16 %v584
      %v788 = vunpack.c.l.b16 %v585
      %v789 = vunpack.c.l.b16 %v586
      %v790 = vunpack.c.l.b16 %v587
      %v791 = vunpack.c.l.b16 %v588
      %v792 = vunpack.c.l.b16 %v589
      %v793 = vunpack.c.l.b16 %v590
      %v794 = vunpack.c.l.b16 %v591
      %v795 = vunpack.c.l.b16 %v592
      %v796 = vunpack.c.l.b16 %v593
      %v797 = vunpack.c.l.b16 %v594
      %v798 = vunpack.c.l.b16 %v595
      %v799 = vunpack.c.l.b16 %v596
      %v800 = vunpack.c.l.b16 %v597
      %v801 = vunpack.c.l.b16 %v598
      %v802 = vunpack.c.l.b16 %v599
      %v803 = vunpack.c.l.b16 %v600
      %v804 = vunpack.c.l.b16 %v601
      %v805 = vunpack.c.l.b16 %v602
      %v806 = vunpack.c.l.b16 %v603
      %v807 = vunpack.c.l.b16 %v604
      %v808 = vunpack.c.l.b16 %v605
      %v809 = vpack.c.b16 %v712, %v711
      %v810 = vpack.c.b16 %v714, %v713
      %v811 = vpack.c.b16 %v716, %v715
      %v812 = vpack.c.b16 %v718, %v717
      %v813 = vpack.c.b16 %v720, %v719
      %v814 = vpack.c.b16 %v722, %v721
      %v815 = vpack.c.b16 %v724, %v723
      %v816 = vpack.c.b16 %v726, %v725
      %v817 = vpack.c.b16 %v728, %v727
      %v818 = vpack.c.b16 %v730, %v729
      %v819 = vpack.c.b16 %v732, %v731
      %v820 = vpack.c.b16 %v734, %v733
      %v821 = vpack.c.b16 %v736, %v735
      %v822 = vpack.c.b16 %v738, %v737
      %v823 = vpack.c.b16 %v740, %v739
      %v824 = vpack.c.b16 %v742, %v741
      %v825 = vpack.c.b16 %v744, %v743
      %v826 = vpack.c.b16 %v746, %v745
      %v827 = vpack.c.b16 %v748, %v747
      %v828 = vpack.c.b16 %v750, %v749
      %v829 = vpack.c.b16 %v752, %v751
      %v830 = vpack.c.b16 %v754, %v753
      %v831 = vpack.c.b16 %v756, %v755
      %v832 = vpack.c.b16 %v758, %v757
      %v833 = vpack.c.b16 %v760, %v759
      %v834 = vpack.c.b16 %v762, %v761
      %v835 = vpack.c.b16 %v764, %v763
      %v836 = vpack.c.b16 %v766, %v765
      %v837 = vpack.c.b16 %v768, %v767
      %v838 = vpack.c.b16 %v770, %v769
      %v839 = vpack.c.b16 %v772, %v771
      %v840 = vpack.c.b16 %v774, %v773
      %v841 = vpack.c.b16 %v776, %v775
      %v842 = vpack.c.b16 %v778, %v777
      %v843 = vpack.c.b16 %v780, %v779
      %v844 = vpack.c.b16 %v782, %v781
      %v845 = vpack.c.b16 %v784, %v783
      %v846 = vpack.c.b16 %v786, %v785
      %v847 = vpack.c.b16 %v788, %v787
      %v848 = vpack.c.b16 %v790, %v789
      %v849 = vpack.c.b16 %v792, %v791
      %v850 = vpack.c.b16 %v794, %v793
      %v851 = vpack.c.b16 %v796, %v795
      %v852 = vpack.c.b16 %v798, %v797
      %v853 = vpack.c.b16 %v800, %v799
      %v854 = vpack.c.b16 %v802, %v801
      %v855 = vpack.c.b16 %v804, %v803
      %v856 = vpack.c.b16 %v806, %v805
      %v857 = vpack.c.b16 %v808, %v807
      %vm907 = vcmask 130048
      %v909 = vsel %vm907, %v458, 0
      %v912 = vsel %vm907, %v465, 0
      %v915 = vsel %vm907, %v472, 0
      %v918 = vsel %vm907, %v479, 0
      %v921 = vsel %vm907, %v486, 0
      %v924 = vsel %vm907, %v493, 0
      %v927 = vsel %vm907, %v500, 0
      %v930 = vsel %vm907, %v507, 0
      %932 = vmatprep.subr.bf16.mxu0 0
      %933 = vmatpush1.bf16.msra.mxu0 %v809
      %934 = vmatprep.subr.bf16.mxu0 0
      %935 = vmatpush1.bf16.msra.mxu0 %v810
      %936 = vmatprep.subr.bf16.mxu0 0
      %937 = vmatpush1.bf16.msra.mxu0 %v811
      %938 = vmatprep.subr.bf16.mxu0 0
      %939 = vmatpush1.bf16.msra.mxu0 %v812
      %940 = vmatprep.subr.bf16.mxu0 0
      %941 = vmatpush1.bf16.msra.mxu0 %v813
      %942 = vmatprep.subr.bf16.mxu0 0
      %943 = vmatpush1.bf16.msra.mxu0 %v814
      %944 = vmatprep.subr.bf16.mxu0 0
      %945 = vmatpush1.bf16.msra.mxu0 %v815
      %946 = vmatprep.subr.bf16.mxu0 0
      %947 = vmatpush1.bf16.msra.mxu0 %v816
      %948 = vmatprep.subr.bf16.mxu0 0
      %949 = vmatpush1.bf16.msra.mxu0 %v817
      %950 = vmatprep.subr.bf16.mxu0 0
      %951 = vmatpush1.bf16.msra.mxu0 %v818
      %952 = vmatprep.subr.bf16.mxu0 0
      %953 = vmatpush1.bf16.msra.mxu0 %v819
      %954 = vmatprep.subr.bf16.mxu0 0
      %955 = vmatpush1.bf16.msra.mxu0 %v820
      %956 = vmatprep.subr.bf16.mxu0 0
      %957 = vmatpush1.bf16.msra.mxu0 %v821
      %958 = vmatprep.subr.bf16.mxu0 0
      %959 = vmatpush1.bf16.msra.mxu0 %v822
      %960 = vmatprep.subr.bf16.mxu0 0
      %961 = vmatpush1.bf16.msra.mxu0 %v823
      %962 = vmatprep.subr.bf16.mxu0 0
      %963 = vmatpush1.bf16.msra.mxu0 %v824
      %964 = vmatprep.mubr.bf16.mxu0 %v453
      %965 = vmatmul.mubr.bf16.gmra.mrb[0].mxu0 %v452
      %v966 = vpop.f32.mrb[0].mxu0
      %v967 = vadd.f32 %v611, %v966
      %v968 = vpop.f32.mrb[0].mxu0
      %v969 = vpop.f32.mrb[0].mxu0
      %v970 = vadd.f32 %v611, %v969
      %v971 = vpop.f32.mrb[0].mxu0
      %972 = vmatprep.mubr.bf16.mxu0 %v460
      %973 = vmatmul.mubr.bf16.gmra.mrb[0].mxu0 %v459
      %v974 = vpop.f32.mrb[0].mxu0
      %v975 = vadd.f32 %v611, %v974
      %v976 = vpop.f32.mrb[0].mxu0
      %v977 = vpop.f32.mrb[0].mxu0
      %v978 = vadd.f32 %v611, %v977
      %v979 = vpop.f32.mrb[0].mxu0
      %980 = vmatprep.mubr.bf16.mxu0 %v467
      %981 = vmatmul.mubr.bf16.gmra.mrb[0].mxu0 %v466
      %v982 = vpop.f32.mrb[0].mxu0
      %v983 = vadd.f32 %v611, %v982
      %v984 = vpop.f32.mrb[0].mxu0
      %v985 = vpop.f32.mrb[0].mxu0
      %v986 = vadd.f32 %v611, %v985
      %v987 = vpop.f32.mrb[0].mxu0
      %988 = vmatprep.mubr.bf16.mxu0 %v474
      %989 = vmatmul.mubr.bf16.gmra.mrb[0].mxu0 %v473
      %v990 = vpop.f32.mrb[0].mxu0
      %v991 = vadd.f32 %v611, %v990
      %v992 = vpop.f32.mrb[0].mxu0
      %v993 = vpop.f32.mrb[0].mxu0
      %v994 = vadd.f32 %v611, %v993
      %v995 = vpop.f32.mrb[0].mxu0
      %996 = vmatprep.mubr.bf16.mxu0 %v481
      %997 = vmatmul.mubr.bf16.gmra.mrb[0].mxu0 %v480
      %v998 = vpop.f32.mrb[0].mxu0
      %v999 = vadd.f32 %v611, %v998
      %v1000 = vpop.f32.mrb[0].mxu0
      %v1001 = vpop.f32.mrb[0].mxu0
      %v1002 = vadd.f32 %v611, %v1001
      %v1003 = vpop.f32.mrb[0].mxu0
      %1004 = vmatprep.mubr.bf16.mxu0 %v488
      %1005 = vmatmul.mubr.bf16.gmra.mrb[0].mxu0 %v487
      %v1006 = vpop.f32.mrb[0].mxu0
      %v1007 = vadd.f32 %v611, %v1006
      %v1008 = vpop.f32.mrb[0].mxu0
      %v1009 = vpop.f32.mrb[0].mxu0
      %v1010 = vadd.f32 %v611, %v1009
      %v1011 = vpop.f32.mrb[0].mxu0
      %1012 = vmatprep.mubr.bf16.mxu0 %v495
      %1013 = vmatmul.mubr.bf16.gmra.mrb[0].mxu0 %v494
      %v1014 = vpop.f32.mrb[0].mxu0
      %v1015 = vadd.f32 %v611, %v1014
      %v1016 = vpop.f32.mrb[0].mxu0
      %v1017 = vpop.f32.mrb[0].mxu0
      %v1018 = vadd.f32 %v611, %v1017
      %v1019 = vpop.f32.mrb[0].mxu0
      %1020 = vmatprep.mubr.bf16.mxu0 %v502
      %1021 = vmatmul.mubr.bf16.gmra.mrb[0].mxu0 %v501
      %v1022 = vpop.f32.mrb[0].mxu0
      %v1023 = vadd.f32 %v611, %v1022
      %v1024 = vpop.f32.mrb[0].mxu0
      %v1025 = vpop.f32.mrb[0].mxu0
      %v1026 = vadd.f32 %v611, %v1025
      %v1027 = vpop.f32.mrb[0].mxu0
      %1028 = vdwg.mxu0
      %1029 = vmatprep.subr.bf16.mxu0 0
      %1030 = vmatpush1.bf16.msra.mxu0 %v825
      %1031 = vmatprep.subr.bf16.mxu0 0
      %1032 = vmatpush1.bf16.msra.mxu0 %v826
      %1033 = vmatprep.subr.bf16.mxu0 0
      %1034 = vmatpush1.bf16.msra.mxu0 %v827
      %1035 = vmatprep.subr.bf16.mxu0 0
      %1036 = vmatpush1.bf16.msra.mxu0 %v828
      %1037 = vmatprep.subr.bf16.mxu0 0
      %1038 = vmatpush1.bf16.msra.mxu0 %v829
      %1039 = vmatprep.subr.bf16.mxu0 0
      %1040 = vmatpush1.bf16.msra.mxu0 %v830
      %1041 = vmatprep.subr.bf16.mxu0 0
      %1042 = vmatpush1.bf16.msra.mxu0 %v831
      %1043 = vmatprep.subr.bf16.mxu0 0
      %1044 = vmatpush1.bf16.msra.mxu0 %v832
      %1045 = vmatprep.subr.bf16.mxu0 0
      %1046 = vmatpush1.bf16.msra.mxu0 %v833
      %1047 = vmatprep.subr.bf16.mxu0 0
      %1048 = vmatpush1.bf16.msra.mxu0 %v834
      %1049 = vmatprep.subr.bf16.mxu0 0
      %1050 = vmatpush1.bf16.msra.mxu0 %v835
      %1051 = vmatprep.subr.bf16.mxu0 0
      %1052 = vmatpush1.bf16.msra.mxu0 %v836
      %1053 = vmatprep.subr.bf16.mxu0 0
      %1054 = vmatpush1.bf16.msra.mxu0 %v837
      %1055 = vmatprep.subr.bf16.mxu0 0
      %1056 = vmatpush1.bf16.msra.mxu0 %v838
      %1057 = vmatprep.subr.bf16.mxu0 0
      %1058 = vmatpush1.bf16.msra.mxu0 %v839
      %1059 = vmatprep.subr.bf16.mxu0 0
      %1060 = vmatpush1.bf16.msra.mxu0 %v840
      %1061 = vmatprep.mubr.bf16.mxu0 %v455
      %1062 = vmatmul.mubr.bf16.gmra.mrb[0].mxu0 %v454
      %v1063 = vpop.f32.mrb[0].mxu0
      %v1064 = vadd.f32 %v967, %v1063
      %v1065 = vpop.f32.mrb[0].mxu0
      %v1066 = vpop.f32.mrb[0].mxu0
      %v1067 = vadd.f32 %v970, %v1066
      %v1068 = vpop.f32.mrb[0].mxu0
      %1069 = vmatprep.mubr.bf16.mxu0 %v462
      %1070 = vmatmul.mubr.bf16.gmra.mrb[0].mxu0 %v461
      %v1071 = vpop.f32.mrb[0].mxu0
      %v1072 = vadd.f32 %v975, %v1071
      %v1073 = vpop.f32.mrb[0].mxu0
      %v1074 = vpop.f32.mrb[0].mxu0
      %v1075 = vadd.f32 %v978, %v1074
      %v1076 = vpop.f32.mrb[0].mxu0
      %1077 = vmatprep.mubr.bf16.mxu0 %v469
      %1078 = vmatmul.mubr.bf16.gmra.mrb[0].mxu0 %v468
      %v1079 = vpop.f32.mrb[0].mxu0
      %v1080 = vadd.f32 %v983, %v1079
      %v1081 = vpop.f32.mrb[0].mxu0
      %v1082 = vpop.f32.mrb[0].mxu0
      %v1083 = vadd.f32 %v986, %v1082
      %v1084 = vpop.f32.mrb[0].mxu0
      %1085 = vmatprep.mubr.bf16.mxu0 %v476
      %1086 = vmatmul.mubr.bf16.gmra.mrb[0].mxu0 %v475
      %v1087 = vpop.f32.mrb[0].mxu0
      %v1088 = vadd.f32 %v991, %v1087
      %v1089 = vpop.f32.mrb[0].mxu0
      %v1090 = vpop.f32.mrb[0].mxu0
      %v1091 = vadd.f32 %v994, %v1090
      %v1092 = vpop.f32.mrb[0].mxu0
      %1093 = vmatprep.mubr.bf16.mxu0 %v483
      %1094 = vmatmul.mubr.bf16.gmra.mrb[0].mxu0 %v482
      %v1095 = vpop.f32.mrb[0].mxu0
      %v1096 = vadd.f32 %v999, %v1095
      %v1097 = vpop.f32.mrb[0].mxu0
      %v1098 = vpop.f32.mrb[0].mxu0
      %v1099 = vadd.f32 %v1002, %v1098
      %v1100 = vpop.f32.mrb[0].mxu0
      %1101 = vmatprep.mubr.bf16.mxu0 %v490
      %1102 = vmatmul.mubr.bf16.gmra.mrb[0].mxu0 %v489
      %v1103 = vpop.f32.mrb[0].mxu0
      %v1104 = vadd.f32 %v1007, %v1103
      %v1105 = vpop.f32.mrb[0].mxu0
      %v1106 = vpop.f32.mrb[0].mxu0
      %v1107 = vadd.f32 %v1010, %v1106
      %v1108 = vpop.f32.mrb[0].mxu0
      %1109 = vmatprep.mubr.bf16.mxu0 %v497
      %1110 = vmatmul.mubr.bf16.gmra.mrb[0].mxu0 %v496
      %v1111 = vpop.f32.mrb[0].mxu0
      %v1112 = vadd.f32 %v1015, %v1111
      %v1113 = vpop.f32.mrb[0].mxu0
      %v1114 = vpop.f32.mrb[0].mxu0
      %v1115 = vadd.f32 %v1018, %v1114
      %v1116 = vpop.f32.mrb[0].mxu0
      %1117 = vmatprep.mubr.bf16.mxu0 %v504
      %1118 = vmatmul.mubr.bf16.gmra.mrb[0].mxu0 %v503
      %v1119 = vpop.f32.mrb[0].mxu0
      %v1120 = vadd.f32 %v1023, %v1119
      %v1121 = vpop.f32.mrb[0].mxu0
      %v1122 = vpop.f32.mrb[0].mxu0
      %v1123 = vadd.f32 %v1026, %v1122
      %v1124 = vpop.f32.mrb[0].mxu0
      %1125 = vdwg.mxu0
      %1126 = vmatprep.subr.bf16.mxu0 0
      %1127 = vmatpush1.bf16.msra.mxu0 %v841
      %1128 = vmatprep.subr.bf16.mxu0 0
      %1129 = vmatpush1.bf16.msra.mxu0 %v842
      %1130 = vmatprep.subr.bf16.mxu0 0
      %1131 = vmatpush1.bf16.msra.mxu0 %v843
      %1132 = vmatprep.subr.bf16.mxu0 0
      %1133 = vmatpush1.bf16.msra.mxu0 %v844
      %1134 = vmatprep.subr.bf16.mxu0 0
      %1135 = vmatpush1.bf16.msra.mxu0 %v845
      %1136 = vmatprep.subr.bf16.mxu0 0
      %1137 = vmatpush1.bf16.msra.mxu0 %v846
      %1138 = vmatprep.subr.bf16.mxu0 0
      %1139 = vmatpush1.bf16.msra.mxu0 %v847
      %1140 = vmatprep.subr.bf16.mxu0 0
      %1141 = vmatpush1.bf16.msra.mxu0 %v848
      %1142 = vmatprep.subr.bf16.mxu0 0
      %1143 = vmatpush1.bf16.msra.mxu0 %v849
      %1144 = vmatprep.subr.bf16.mxu0 0
      %1145 = vmatpush1.bf16.msra.mxu0 %v850
      %1146 = vmatprep.subr.bf16.mxu0 0
      %1147 = vmatpush1.bf16.msra.mxu0 %v851
      %1148 = vmatprep.subr.bf16.mxu0 0
      %1149 = vmatpush1.bf16.msra.mxu0 %v852
      %1150 = vmatprep.subr.bf16.mxu0 0
      %1151 = vmatpush1.bf16.msra.mxu0 %v853
      %1152 = vmatprep.subr.bf16.mxu0 0
      %1153 = vmatpush1.bf16.msra.mxu0 %v854
      %1154 = vmatprep.subr.bf16.mxu0 0
      %1155 = vmatpush1.bf16.msra.mxu0 %v855
      %1156 = vmatprep.subr.bf16.mxu0 0
      %1157 = vmatpush1.bf16.msra.mxu0 %v856
      %1158 = vmatprep.mubr.bf16.mxu0 %v457
      %1159 = vmatmul.mubr.bf16.gmra.mrb[0].mxu0 %v456
      %v1160 = vpop.f32.mrb[0].mxu0
      %v1161 = vadd.f32 %v1064, %v1160
      %v1162 = vpop.f32.mrb[0].mxu0
      %v1163 = vpop.f32.mrb[0].mxu0
      %v1164 = vadd.f32 %v1067, %v1163
      %v1165 = vpop.f32.mrb[0].mxu0
      %1166 = vmatprep.mubr.bf16.mxu0 %v464
      %1167 = vmatmul.mubr.bf16.gmra.mrb[0].mxu0 %v463
      %v1168 = vpop.f32.mrb[0].mxu0
      %v1169 = vadd.f32 %v1072, %v1168
      %v1170 = vpop.f32.mrb[0].mxu0
      %v1171 = vpop.f32.mrb[0].mxu0
      %v1172 = vadd.f32 %v1075, %v1171
      %v1173 = vpop.f32.mrb[0].mxu0
      %1174 = vmatprep.mubr.bf16.mxu0 %v471
      %1175 = vmatmul.mubr.bf16.gmra.mrb[0].mxu0 %v470
      %v1176 = vpop.f32.mrb[0].mxu0
      %v1177 = vadd.f32 %v1080, %v1176
      %v1178 = vpop.f32.mrb[0].mxu0
      %v1179 = vpop.f32.mrb[0].mxu0
      %v1180 = vadd.f32 %v1083, %v1179
      %v1181 = vpop.f32.mrb[0].mxu0
      %1182 = vmatprep.mubr.bf16.mxu0 %v478
      %1183 = vmatmul.mubr.bf16.gmra.mrb[0].mxu0 %v477
      %v1184 = vpop.f32.mrb[0].mxu0
      %v1185 = vadd.f32 %v1088, %v1184
      %v1186 = vpop.f32.mrb[0].mxu0
      %v1187 = vpop.f32.mrb[0].mxu0
      %v1188 = vadd.f32 %v1091, %v1187
      %v1189 = vpop.f32.mrb[0].mxu0
      %1190 = vmatprep.mubr.bf16.mxu0 %v485
      %1191 = vmatmul.mubr.bf16.gmra.mrb[0].mxu0 %v484
      %v1192 = vpop.f32.mrb[0].mxu0
      %v1193 = vadd.f32 %v1096, %v1192
      %v1194 = vpop.f32.mrb[0].mxu0
      %v1195 = vpop.f32.mrb[0].mxu0
      %v1196 = vadd.f32 %v1099, %v1195
      %v1197 = vpop.f32.mrb[0].mxu0
      %1198 = vmatprep.mubr.bf16.mxu0 %v492
      %1199 = vmatmul.mubr.bf16.gmra.mrb[0].mxu0 %v491
      %v1200 = vpop.f32.mrb[0].mxu0
      %v1201 = vadd.f32 %v1104, %v1200
      %v1202 = vpop.f32.mrb[0].mxu0
      %v1203 = vpop.f32.mrb[0].mxu0
      %v1204 = vadd.f32 %v1107, %v1203
      %v1205 = vpop.f32.mrb[0].mxu0
      %1206 = vmatprep.mubr.bf16.mxu0 %v499
      %1207 = vmatmul.mubr.bf16.gmra.mrb[0].mxu0 %v498
      %v1208 = vpop.f32.mrb[0].mxu0
      %v1209 = vadd.f32 %v1112, %v1208
      %v1210 = vpop.f32.mrb[0].mxu0
      %v1211 = vpop.f32.mrb[0].mxu0
      %v1212 = vadd.f32 %v1115, %v1211
      %v1213 = vpop.f32.mrb[0].mxu0
      %1214 = vmatprep.mubr.bf16.mxu0 %v506
      %1215 = vmatmul.mubr.bf16.gmra.mrb[0].mxu0 %v505
      %v1216 = vpop.f32.mrb[0].mxu0
      %v1217 = vadd.f32 %v1120, %v1216
      %v1218 = vpop.f32.mrb[0].mxu0
      %v1219 = vpop.f32.mrb[0].mxu0
      %v1220 = vadd.f32 %v1123, %v1219
      %v1221 = vpop.f32.mrb[0].mxu0
      %1222 = vdwg.mxu0
      %1223 = vmatprep.subr.bf16.mxu0 0
      %1224 = vmatpush1.bf16.msra.mxu0 %v857
      %1225 = vmatprep.subr.bf16.mxu0 0
      %1226 = vmatpush1.bf16.msra.mxu0 0
      %1227 = vmatprep.subr.bf16.mxu0 0
      %1228 = vmatpush1.bf16.msra.mxu0 0
      %1229 = vmatprep.subr.bf16.mxu0 0
      %1230 = vmatpush1.bf16.msra.mxu0 0
      %1231 = vmatprep.subr.bf16.mxu0 0
      %1232 = vmatpush1.bf16.msra.mxu0 0
      %1233 = vmatprep.subr.bf16.mxu0 0
      %1234 = vmatpush1.bf16.msra.mxu0 0
      %1235 = vmatprep.subr.bf16.mxu0 0
      %1236 = vmatpush1.bf16.msra.mxu0 0
      %1237 = vmatprep.subr.bf16.mxu0 0
      %1238 = vmatpush1.bf16.msra.mxu0 0
      %1239 = vmatprep.subr.bf16.mxu0 0
      %1240 = vmatpush1.bf16.msra.mxu0 0
      %1241 = vmatprep.subr.bf16.mxu0 0
      %1242 = vmatpush1.bf16.msra.mxu0 0
      %1243 = vmatprep.subr.bf16.mxu0 0
      %1244 = vmatpush1.bf16.msra.mxu0 0
      %1245 = vmatprep.subr.bf16.mxu0 0
      %1246 = vmatpush1.bf16.msra.mxu0 0
      %1247 = vmatprep.subr.bf16.mxu0 0
      %1248 = vmatpush1.bf16.msra.mxu0 0
      %1249 = vmatprep.subr.bf16.mxu0 0
      %1250 = vmatpush1.bf16.msra.mxu0 0
      %1251 = vmatprep.subr.bf16.mxu0 0
      %1252 = vmatpush1.bf16.msra.mxu0 0
      %1253 = vmatprep.subr.bf16.mxu0 0
      %1254 = vmatpush1.bf16.msra.mxu0 0
      %1255 = vmatprep.mubr.bf16.mxu0 0
      %1256 = vmatmul.mubr.bf16.gmra.mrb[0].mxu0 %v909
      %v1257 = vpop.f32.mrb[0].mxu0
      %v1258 = vadd.f32 %v1161, %v1257
      %v1259 = vpop.f32.mrb[0].mxu0
      %v1260 = vpop.f32.mrb[0].mxu0
      %v1261 = vadd.f32 %v1164, %v1260
      %v1262 = vpop.f32.mrb[0].mxu0
      %1263 = vmatprep.mubr.bf16.mxu0 0
      %1264 = vmatmul.mubr.bf16.gmra.mrb[0].mxu0 %v912
      %v1265 = vpop.f32.mrb[0].mxu0
      %v1266 = vadd.f32 %v1169, %v1265
      %v1267 = vpop.f32.mrb[0].mxu0
      %v1268 = vpop.f32.mrb[0].mxu0
      %v1269 = vadd.f32 %v1172, %v1268
      %v1270 = vpop.f32.mrb[0].mxu0
      %1271 = vmatprep.mubr.bf16.mxu0 0
      %1272 = vmatmul.mubr.bf16.gmra.mrb[0].mxu0 %v915
      %v1273 = vpop.f32.mrb[0].mxu0
      %v1274 = vadd.f32 %v1177, %v1273
      %v1275 = vpop.f32.mrb[0].mxu0
      %v1276 = vpop.f32.mrb[0].mxu0
      %v1277 = vadd.f32 %v1180, %v1276
      %v1278 = vpop.f32.mrb[0].mxu0
      %1279 = vmatprep.mubr.bf16.mxu0 0
      %1280 = vmatmul.mubr.bf16.gmra.mrb[0].mxu0 %v918
      %v1281 = vpop.f32.mrb[0].mxu0
      %v1282 = vadd.f32 %v1185, %v1281
      %v1283 = vpop.f32.mrb[0].mxu0
      %v1284 = vpop.f32.mrb[0].mxu0
      %v1285 = vadd.f32 %v1188, %v1284
      %v1286 = vpop.f32.mrb[0].mxu0
      %1287 = vmatprep.mubr.bf16.mxu0 0
      %1288 = vmatmul.mubr.bf16.gmra.mrb[0].mxu0 %v921
      %v1289 = vpop.f32.mrb[0].mxu0
      %v1290 = vadd.f32 %v1193, %v1289
      %v1291 = vpop.f32.mrb[0].mxu0
      %v1292 = vpop.f32.mrb[0].mxu0
      %v1293 = vadd.f32 %v1196, %v1292
      %v1294 = vpop.f32.mrb[0].mxu0
      %1295 = vmatprep.mubr.bf16.mxu0 0
      %1296 = vmatmul.mubr.bf16.gmra.mrb[0].mxu0 %v924
      %v1297 = vpop.f32.mrb[0].mxu0
      %v1298 = vadd.f32 %v1201, %v1297
      %v1299 = vpop.f32.mrb[0].mxu0
      %v1300 = vpop.f32.mrb[0].mxu0
      %v1301 = vadd.f32 %v1204, %v1300
      %v1302 = vpop.f32.mrb[0].mxu0
      %1303 = vmatprep.mubr.bf16.mxu0 0
      %1304 = vmatmul.mubr.bf16.gmra.mrb[0].mxu0 %v927
      %v1305 = vpop.f32.mrb[0].mxu0
      %v1306 = vadd.f32 %v1209, %v1305
      %v1307 = vpop.f32.mrb[0].mxu0
      %v1308 = vpop.f32.mrb[0].mxu0
      %v1309 = vadd.f32 %v1212, %v1308
      %v1310 = vpop.f32.mrb[0].mxu0
      %1311 = vmatprep.mubr.bf16.mxu0 0
      %1312 = vmatmul.mubr.bf16.gmra.mrb[0].mxu0 %v930
      %v1313 = vpop.f32.mrb[0].mxu0
      %v1314 = vadd.f32 %v1217, %v1313
      %v1315 = vpop.f32.mrb[0].mxu0
      %v1316 = vpop.f32.mrb[0].mxu0
      %v1317 = vadd.f32 %v1220, %v1316
      %v1318 = vpop.f32.mrb[0].mxu0
      %1319 = vdwg.mxu0
      %v1320 = vmax.f32 %v1258, 0.0
      %v1321 = vmax.f32 %v1261, 0.0
      %v1322 = vmax.f32 %v1266, 0.0
      %v1323 = vmax.f32 %v1269, 0.0
      %v1324 = vmax.f32 %v1274, 0.0
      %v1325 = vmax.f32 %v1277, 0.0
      %v1326 = vmax.f32 %v1282, 0.0
      %v1327 = vmax.f32 %v1285, 0.0
      %v1328 = vmax.f32 %v1290, 0.0
      %v1329 = vmax.f32 %v1293, 0.0
      %v1330 = vmax.f32 %v1298, 0.0
      %v1331 = vmax.f32 %v1301, 0.0
      %v1332 = vmax.f32 %v1306, 0.0
      %v1333 = vmax.f32 %v1309, 0.0
      %v1334 = vmax.f32 %v1314, 0.0
      %v1335 = vmax.f32 %v1317, 0.0
      %v1336 = vpack.c.bf16 %v1321, %v1320
      %v1337 = vpack.c.bf16 %v1323, %v1322
      %v1338 = vpack.c.bf16 %v1325, %v1324
      %v1339 = vpack.c.bf16 %v1327, %v1326
      %v1340 = vpack.c.bf16 %v1329, %v1328
      %v1341 = vpack.c.bf16 %v1331, %v1330
      %v1342 = vpack.c.bf16 %v1333, %v1332
      %v1343 = vpack.c.bf16 %v1335, %v1334
      %v1344 = vld [vmem:[%s3] sm:$0xf]
      %v1345 = vld [vmem:[%s3 + $0x4] sm:$0xf]
      %v1346 = vld [vmem:[%s3 + $0x8] sm:$0xf]
      %v1347 = vld [vmem:[%s3 + $0xc] sm:$0xf]
      %v1348 = vld [vmem:[%s3 + $0x10] sm:$0xf]
      %v1349 = vld [vmem:[%s3 + $0x14] sm:$0xf]
      %v1350 = vld [vmem:[%s3 + $0x18] sm:$0xf]
      %v1351 = vld [vmem:[%s3 + $0x1c] sm:$0xf]
      %v1352 = vld [vmem:[%s3 + $0x20] sm:$0xf]
      %v1353 = vld [vmem:[%s3 + $0x24] sm:$0xf]
      %v1354 = vld [vmem:[%s3 + $0x28] sm:$0xf]
      %v1355 = vld [vmem:[%s3 + $0x2c] sm:$0xf]
      %v1356 = vld [vmem:[%s3 + $0x30] sm:$0xf]
      %v1357 = vld [vmem:[%s3 + $0x34] sm:$0xf]
      %v1358 = vld [vmem:[%s3 + $0x38] sm:$0xf]
      %v1359 = vld [vmem:[%s3 + $0x3c] sm:$0xf]
      %v1360 = vld [vmem:[%s4] sm:$0x1]
      %v1362 = vlaneseq
      %v1363 = vshrl.u32 %v1362, 7
      %v1364 = vsub.s32 0, %v1363
      %v1365 = vrot.slane %v1360, %v1364
      %v1383 = vunpack.c.l.b16 %v1344
      %v1384 = vunpack.c.l.b16 %v1345
      %v1385 = vunpack.c.l.b16 %v1346
      %v1386 = vunpack.c.l.b16 %v1347
      %v1387 = vunpack.c.l.b16 %v1348
      %v1388 = vunpack.c.l.b16 %v1349
      %v1389 = vunpack.c.l.b16 %v1350
      %v1390 = vunpack.c.l.b16 %v1351
      %v1391 = vunpack.c.l.b16 %v1352
      %v1392 = vunpack.c.l.b16 %v1353
      %v1393 = vunpack.c.l.b16 %v1354
      %v1394 = vunpack.c.l.b16 %v1355
      %v1395 = vunpack.c.l.b16 %v1356
      %v1396 = vunpack.c.l.b16 %v1357
      %v1397 = vunpack.c.l.b16 %v1358
      %v1398 = vunpack.c.l.b16 %v1359
      %v1399 = vpack.c.b16 %v1384, %v1383
      %v1400 = vpack.c.b16 %v1386, %v1385
      %v1401 = vpack.c.b16 %v1388, %v1387
      %v1402 = vpack.c.b16 %v1390, %v1389
      %v1403 = vpack.c.b16 %v1392, %v1391
      %v1404 = vpack.c.b16 %v1394, %v1393
      %v1405 = vpack.c.b16 %v1396, %v1395
      %v1406 = vpack.c.b16 %v1398, %v1397
      %1415 = vmatprep.subr.bf16.mxu0 0
      %1416 = vmatpush1.bf16.msra.mxu0 %v1399
      %1417 = vmatprep.subr.bf16.mxu0 0
      %1418 = vmatpush1.bf16.msra.mxu0 %v1400
      %1419 = vmatprep.subr.bf16.mxu0 0
      %1420 = vmatpush1.bf16.msra.mxu0 %v1401
      %1421 = vmatprep.subr.bf16.mxu0 0
      %1422 = vmatpush1.bf16.msra.mxu0 %v1402
      %1423 = vmatprep.subr.bf16.mxu0 0
      %1424 = vmatpush1.bf16.msra.mxu0 %v1403
      %1425 = vmatprep.subr.bf16.mxu0 0
      %1426 = vmatpush1.bf16.msra.mxu0 %v1404
      %1427 = vmatprep.subr.bf16.mxu0 0
      %1428 = vmatpush1.bf16.msra.mxu0 %v1405
      %1429 = vmatprep.subr.bf16.mxu0 0
      %1430 = vmatpush1.bf16.msra.mxu0 %v1406
      %1431 = vmatprep.subr.bf16.mxu0 0
      %1432 = vmatpush1.bf16.msra.mxu0 0
      %1433 = vmatprep.subr.bf16.mxu0 0
      %1434 = vmatpush1.bf16.msra.mxu0 0
      %1435 = vmatprep.subr.bf16.mxu0 0
      %1436 = vmatpush1.bf16.msra.mxu0 0
      %1437 = vmatprep.subr.bf16.mxu0 0
      %1438 = vmatpush1.bf16.msra.mxu0 0
      %1439 = vmatprep.subr.bf16.mxu0 0
      %1440 = vmatpush1.bf16.msra.mxu0 0
      %1441 = vmatprep.subr.bf16.mxu0 0
      %1442 = vmatpush1.bf16.msra.mxu0 0
      %1443 = vmatprep.subr.bf16.mxu0 0
      %1444 = vmatpush1.bf16.msra.mxu0 0
      %1445 = vmatprep.subr.bf16.mxu0 0
      %1446 = vmatpush1.bf16.msra.mxu0 0
      %1447 = vmatprep.mubr.bf16.mxu0 0
      %1448 = vmatmul.mubr.bf16.gmra.mrb[0].mxu0 %v1336
      %v1449 = vpop.f32.mrb[0].mxu0
      %v1450 = vadd.f32 %v1365, %v1449
      %v1451 = vpop.f32.mrb[0].mxu0
      %v1452 = vpop.f32.mrb[0].mxu0
      %v1453 = vadd.f32 %v1365, %v1452
      %v1454 = vpop.f32.mrb[0].mxu0
      %1455 = vmatprep.mubr.bf16.mxu0 0
      %1456 = vmatmul.mubr.bf16.gmra.mrb[0].mxu0 %v1337
      %v1457 = vpop.f32.mrb[0].mxu0
      %v1458 = vadd.f32 %v1365, %v1457
      %v1459 = vpop.f32.mrb[0].mxu0
      %v1460 = vpop.f32.mrb[0].mxu0
      %v1461 = vadd.f32 %v1365, %v1460
      %v1462 = vpop.f32.mrb[0].mxu0
      %1463 = vmatprep.mubr.bf16.mxu0 0
      %1464 = vmatmul.mubr.bf16.gmra.mrb[0].mxu0 %v1338
      %v1465 = vpop.f32.mrb[0].mxu0
      %v1466 = vadd.f32 %v1365, %v1465
      %v1467 = vpop.f32.mrb[0].mxu0
      %v1468 = vpop.f32.mrb[0].mxu0
      %v1469 = vadd.f32 %v1365, %v1468
      %v1470 = vpop.f32.mrb[0].mxu0
      %1471 = vmatprep.mubr.bf16.mxu0 0
      %1472 = vmatmul.mubr.bf16.gmra.mrb[0].mxu0 %v1339
      %v1473 = vpop.f32.mrb[0].mxu0
      %v1474 = vadd.f32 %v1365, %v1473
      %v1475 = vpop.f32.mrb[0].mxu0
      %v1476 = vpop.f32.mrb[0].mxu0
      %v1477 = vadd.f32 %v1365, %v1476
      %v1478 = vpop.f32.mrb[0].mxu0
      %1479 = vmatprep.mubr.bf16.mxu0 0
      %1480 = vmatmul.mubr.bf16.gmra.mrb[0].mxu0 %v1340
      %v1481 = vpop.f32.mrb[0].mxu0
      %v1482 = vadd.f32 %v1365, %v1481
      %v1483 = vpop.f32.mrb[0].mxu0
      %v1484 = vpop.f32.mrb[0].mxu0
      %v1485 = vadd.f32 %v1365, %v1484
      %v1486 = vpop.f32.mrb[0].mxu0
      %1487 = vmatprep.mubr.bf16.mxu0 0
      %1488 = vmatmul.mubr.bf16.gmra.mrb[0].mxu0 %v1341
      %v1489 = vpop.f32.mrb[0].mxu0
      %v1490 = vadd.f32 %v1365, %v1489
      %v1491 = vpop.f32.mrb[0].mxu0
      %v1492 = vpop.f32.mrb[0].mxu0
      %v1493 = vadd.f32 %v1365, %v1492
      %v1494 = vpop.f32.mrb[0].mxu0
      %1495 = vmatprep.mubr.bf16.mxu0 0
      %1496 = vmatmul.mubr.bf16.gmra.mrb[0].mxu0 %v1342
      %v1497 = vpop.f32.mrb[0].mxu0
      %v1498 = vadd.f32 %v1365, %v1497
      %v1499 = vpop.f32.mrb[0].mxu0
      %v1500 = vpop.f32.mrb[0].mxu0
      %v1501 = vadd.f32 %v1365, %v1500
      %v1502 = vpop.f32.mrb[0].mxu0
      %1503 = vmatprep.mubr.bf16.mxu0 0
      %1504 = vmatmul.mubr.bf16.gmra.mrb[0].mxu0 %v1343
      %v1505 = vpop.f32.mrb[0].mxu0
      %v1506 = vadd.f32 %v1365, %v1505
      %v1507 = vpop.f32.mrb[0].mxu0
      %v1508 = vpop.f32.mrb[0].mxu0
      %v1509 = vadd.f32 %v1365, %v1508
      %v1510 = vpop.f32.mrb[0].mxu0
      %1511 = vdwg.mxu0
      %v1512 = vmax.f32 %v1450, 0.0
      %v1513 = vmax.f32 %v1453, 0.0
      %v1514 = vmax.f32 %v1458, 0.0
      %v1515 = vmax.f32 %v1461, 0.0
      %v1516 = vmax.f32 %v1466, 0.0
      %v1517 = vmax.f32 %v1469, 0.0
      %v1518 = vmax.f32 %v1474, 0.0
      %v1519 = vmax.f32 %v1477, 0.0
      %v1520 = vmax.f32 %v1482, 0.0
      %v1521 = vmax.f32 %v1485, 0.0
      %v1522 = vmax.f32 %v1490, 0.0
      %v1523 = vmax.f32 %v1493, 0.0
      %v1524 = vmax.f32 %v1498, 0.0
      %v1525 = vmax.f32 %v1501, 0.0
      %v1526 = vmax.f32 %v1506, 0.0
      %v1527 = vmax.f32 %v1509, 0.0
      %v1528 = vpack.c.bf16 %v1513, %v1512
      %v1529 = vpack.c.bf16 %v1515, %v1514
      %v1530 = vpack.c.bf16 %v1517, %v1516
      %v1531 = vpack.c.bf16 %v1519, %v1518
      %v1532 = vpack.c.bf16 %v1521, %v1520
      %v1533 = vpack.c.bf16 %v1523, %v1522
      %v1534 = vpack.c.bf16 %v1525, %v1524
      %v1535 = vpack.c.bf16 %v1527, %v1526
      %v1536 = vld [vmem:[%s5] sm:$0xf]
      %v1537 = vld [vmem:[%s5 + $0x4] sm:$0xf]
      %v1538 = vld [vmem:[%s5 + $0x8] sm:$0xf]
      %v1539 = vld [vmem:[%s5 + $0xc] sm:$0xf]
      %v1540 = vld [vmem:[%s5 + $0x10] sm:$0xf]
      %v1541 = vld [vmem:[%s5 + $0x14] sm:$0xf]
      %v1542 = vld [vmem:[%s5 + $0x18] sm:$0xf]
      %v1543 = vld [vmem:[%s5 + $0x1c] sm:$0xf]
      %v1544 = vld [vmem:[%s5 + $0x20] sm:$0xf]
      %v1545 = vld [vmem:[%s5 + $0x24] sm:$0xf]
      %v1546 = vld [vmem:[%s5 + $0x28] sm:$0xf]
      %v1547 = vld [vmem:[%s5 + $0x2c] sm:$0xf]
      %v1548 = vld [vmem:[%s5 + $0x30] sm:$0xf]
      %v1549 = vld [vmem:[%s5 + $0x34] sm:$0xf]
      %v1550 = vld [vmem:[%s5 + $0x38] sm:$0xf]
      %v1551 = vld [vmem:[%s5 + $0x3c] sm:$0xf]
      %v1552 = vld [vmem:[%s6] sm:$0x1]
      %v1554 = vlaneseq
      %v1555 = vshrl.u32 %v1554, 7
      %v1556 = vsub.s32 0, %v1555
      %v1557 = vrot.slane %v1552, %v1556
      %v1575 = vunpack.c.l.b16 %v1536
      %v1576 = vunpack.c.l.b16 %v1537
      %v1577 = vunpack.c.l.b16 %v1538
      %v1578 = vunpack.c.l.b16 %v1539
      %v1579 = vunpack.c.l.b16 %v1540
      %v1580 = vunpack.c.l.b16 %v1541
      %v1581 = vunpack.c.l.b16 %v1542
      %v1582 = vunpack.c.l.b16 %v1543
      %v1583 = vunpack.c.l.b16 %v1544
      %v1584 = vunpack.c.l.b16 %v1545
      %v1585 = vunpack.c.l.b16 %v1546
      %v1586 = vunpack.c.l.b16 %v1547
      %v1587 = vunpack.c.l.b16 %v1548
      %v1588 = vunpack.c.l.b16 %v1549
      %v1589 = vunpack.c.l.b16 %v1550
      %v1590 = vunpack.c.l.b16 %v1551
      %v1591 = vpack.c.b16 %v1576, %v1575
      %v1592 = vpack.c.b16 %v1578, %v1577
      %v1593 = vpack.c.b16 %v1580, %v1579
      %v1594 = vpack.c.b16 %v1582, %v1581
      %v1595 = vpack.c.b16 %v1584, %v1583
      %v1596 = vpack.c.b16 %v1586, %v1585
      %v1597 = vpack.c.b16 %v1588, %v1587
      %v1598 = vpack.c.b16 %v1590, %v1589
      %1607 = vmatprep.subr.bf16.mxu0 0
      %1608 = vmatpush1.bf16.msra.mxu0 %v1591
      %1609 = vmatprep.subr.bf16.mxu0 0
      %1610 = vmatpush1.bf16.msra.mxu0 %v1592
      %1611 = vmatprep.subr.bf16.mxu0 0
      %1612 = vmatpush1.bf16.msra.mxu0 %v1593
      %1613 = vmatprep.subr.bf16.mxu0 0
      %1614 = vmatpush1.bf16.msra.mxu0 %v1594
      %1615 = vmatprep.subr.bf16.mxu0 0
      %1616 = vmatpush1.bf16.msra.mxu0 %v1595
      %1617 = vmatprep.subr.bf16.mxu0 0
      %1618 = vmatpush1.bf16.msra.mxu0 %v1596
      %1619 = vmatprep.subr.bf16.mxu0 0
      %1620 = vmatpush1.bf16.msra.mxu0 %v1597
      %1621 = vmatprep.subr.bf16.mxu0 0
      %1622 = vmatpush1.bf16.msra.mxu0 %v1598
      %1623 = vmatprep.subr.bf16.mxu0 0
      %1624 = vmatpush1.bf16.msra.mxu0 0
      %1625 = vmatprep.subr.bf16.mxu0 0
      %1626 = vmatpush1.bf16.msra.mxu0 0
      %1627 = vmatprep.subr.bf16.mxu0 0
      %1628 = vmatpush1.bf16.msra.mxu0 0
      %1629 = vmatprep.subr.bf16.mxu0 0
      %1630 = vmatpush1.bf16.msra.mxu0 0
      %1631 = vmatprep.subr.bf16.mxu0 0
      %1632 = vmatpush1.bf16.msra.mxu0 0
      %1633 = vmatprep.subr.bf16.mxu0 0
      %1634 = vmatpush1.bf16.msra.mxu0 0
      %1635 = vmatprep.subr.bf16.mxu0 0
      %1636 = vmatpush1.bf16.msra.mxu0 0
      %1637 = vmatprep.subr.bf16.mxu0 0
      %1638 = vmatpush1.bf16.msra.mxu0 0
      %1639 = vmatprep.mubr.bf16.mxu0 0
      %1640 = vmatmul.mubr.bf16.gmra.mrb[0].mxu0 %v1528
      %v1641 = vpop.f32.mrb[0].mxu0
      %v1642 = vadd.f32 %v1557, %v1641
      %v1643 = vpop.f32.mrb[0].mxu0
      %v1644 = vpop.f32.mrb[0].mxu0
      %v1645 = vadd.f32 %v1557, %v1644
      %v1646 = vpop.f32.mrb[0].mxu0
      %1647 = vmatprep.mubr.bf16.mxu0 0
      %1648 = vmatmul.mubr.bf16.gmra.mrb[0].mxu0 %v1529
      %v1649 = vpop.f32.mrb[0].mxu0
      %v1650 = vadd.f32 %v1557, %v1649
      %v1651 = vpop.f32.mrb[0].mxu0
      %v1652 = vpop.f32.mrb[0].mxu0
      %v1653 = vadd.f32 %v1557, %v1652
      %v1654 = vpop.f32.mrb[0].mxu0
      %1655 = vmatprep.mubr.bf16.mxu0 0
      %1656 = vmatmul.mubr.bf16.gmra.mrb[0].mxu0 %v1530
      %v1657 = vpop.f32.mrb[0].mxu0
      %v1658 = vadd.f32 %v1557, %v1657
      %v1659 = vpop.f32.mrb[0].mxu0
      %v1660 = vpop.f32.mrb[0].mxu0
      %v1661 = vadd.f32 %v1557, %v1660
      %v1662 = vpop.f32.mrb[0].mxu0
      %1663 = vmatprep.mubr.bf16.mxu0 0
      %1664 = vmatmul.mubr.bf16.gmra.mrb[0].mxu0 %v1531
      %v1665 = vpop.f32.mrb[0].mxu0
      %v1666 = vadd.f32 %v1557, %v1665
      %v1667 = vpop.f32.mrb[0].mxu0
      %v1668 = vpop.f32.mrb[0].mxu0
      %v1669 = vadd.f32 %v1557, %v1668
      %v1670 = vpop.f32.mrb[0].mxu0
      %1671 = vmatprep.mubr.bf16.mxu0 0
      %1672 = vmatmul.mubr.bf16.gmra.mrb[0].mxu0 %v1532
      %v1673 = vpop.f32.mrb[0].mxu0
      %v1674 = vadd.f32 %v1557, %v1673
      %v1675 = vpop.f32.mrb[0].mxu0
      %v1676 = vpop.f32.mrb[0].mxu0
      %v1677 = vadd.f32 %v1557, %v1676
      %v1678 = vpop.f32.mrb[0].mxu0
      %1679 = vmatprep.mubr.bf16.mxu0 0
      %1680 = vmatmul.mubr.bf16.gmra.mrb[0].mxu0 %v1533
      %v1681 = vpop.f32.mrb[0].mxu0
      %v1682 = vadd.f32 %v1557, %v1681
      %v1683 = vpop.f32.mrb[0].mxu0
      %v1684 = vpop.f32.mrb[0].mxu0
      %v1685 = vadd.f32 %v1557, %v1684
      %v1686 = vpop.f32.mrb[0].mxu0
      %1687 = vmatprep.mubr.bf16.mxu0 0
      %1688 = vmatmul.mubr.bf16.gmra.mrb[0].mxu0 %v1534
      %v1689 = vpop.f32.mrb[0].mxu0
      %v1690 = vadd.f32 %v1557, %v1689
      %v1691 = vpop.f32.mrb[0].mxu0
      %v1692 = vpop.f32.mrb[0].mxu0
      %v1693 = vadd.f32 %v1557, %v1692
      %v1694 = vpop.f32.mrb[0].mxu0
      %1695 = vmatprep.mubr.bf16.mxu0 0
      %1696 = vmatmul.mubr.bf16.gmra.mrb[0].mxu0 %v1535
      %v1697 = vpop.f32.mrb[0].mxu0
      %v1698 = vadd.f32 %v1557, %v1697
      %v1699 = vpop.f32.mrb[0].mxu0
      %v1700 = vpop.f32.mrb[0].mxu0
      %v1701 = vadd.f32 %v1557, %v1700
      %v1702 = vpop.f32.mrb[0].mxu0
      %1703 = vdwg.mxu0
      %v1704 = vmax.f32 %v1642, 0.0
      %v1705 = vmax.f32 %v1645, 0.0
      %v1706 = vmax.f32 %v1650, 0.0
      %v1707 = vmax.f32 %v1653, 0.0
      %v1708 = vmax.f32 %v1658, 0.0
      %v1709 = vmax.f32 %v1661, 0.0
      %v1710 = vmax.f32 %v1666, 0.0
      %v1711 = vmax.f32 %v1669, 0.0
      %v1712 = vmax.f32 %v1674, 0.0
      %v1713 = vmax.f32 %v1677, 0.0
      %v1714 = vmax.f32 %v1682, 0.0
      %v1715 = vmax.f32 %v1685, 0.0
      %v1716 = vmax.f32 %v1690, 0.0
      %v1717 = vmax.f32 %v1693, 0.0
      %v1718 = vmax.f32 %v1698, 0.0
      %v1719 = vmax.f32 %v1701, 0.0
      %v1720 = vpack.c.bf16 %v1705, %v1704
      %v1721 = vpack.c.bf16 %v1707, %v1706
      %v1722 = vpack.c.bf16 %v1709, %v1708
      %v1723 = vpack.c.bf16 %v1711, %v1710
      %v1724 = vpack.c.bf16 %v1713, %v1712
      %v1725 = vpack.c.bf16 %v1715, %v1714
      %v1726 = vpack.c.bf16 %v1717, %v1716
      %v1727 = vpack.c.bf16 %v1719, %v1718
      %v1728 = vld [vmem:[%s7] sm:$0xf]
      %v1729 = vld [vmem:[%s7 + $0x4] sm:$0xf]
      %v1730 = vld [vmem:[%s7 + $0x8] sm:$0xf]
      %v1731 = vld [vmem:[%s7 + $0xc] sm:$0xf]
      %v1732 = vld [vmem:[%s7 + $0x10] sm:$0xf]
      %v1733 = vld [vmem:[%s7 + $0x14] sm:$0xf]
      %v1734 = vld [vmem:[%s7 + $0x18] sm:$0xf]
      %v1735 = vld [vmem:[%s7 + $0x1c] sm:$0xf]
      %v1736 = vld [vmem:[%s7 + $0x20] sm:$0xf]
      %v1737 = vld [vmem:[%s7 + $0x24] sm:$0xf]
      %v1738 = vld [vmem:[%s7 + $0x28] sm:$0xf]
      %v1739 = vld [vmem:[%s7 + $0x2c] sm:$0xf]
      %v1740 = vld [vmem:[%s7 + $0x30] sm:$0xf]
      %v1741 = vld [vmem:[%s7 + $0x34] sm:$0xf]
      %v1742 = vld [vmem:[%s7 + $0x38] sm:$0xf]
      %v1743 = vld [vmem:[%s7 + $0x3c] sm:$0xf]
      %v1744 = vld [vmem:[%s8] sm:$0x1]
      %v1746 = vlaneseq
      %v1747 = vshrl.u32 %v1746, 7
      %v1748 = vsub.s32 0, %v1747
      %v1749 = vrot.slane %v1744, %v1748
      %v1767 = vunpack.c.l.b16 %v1728
      %v1768 = vunpack.c.l.b16 %v1729
      %v1769 = vunpack.c.l.b16 %v1730
      %v1770 = vunpack.c.l.b16 %v1731
      %v1771 = vunpack.c.l.b16 %v1732
      %v1772 = vunpack.c.l.b16 %v1733
      %v1773 = vunpack.c.l.b16 %v1734
      %v1774 = vunpack.c.l.b16 %v1735
      %v1775 = vunpack.c.l.b16 %v1736
      %v1776 = vunpack.c.l.b16 %v1737
      %v1777 = vunpack.c.l.b16 %v1738
      %v1778 = vunpack.c.l.b16 %v1739
      %v1779 = vunpack.c.l.b16 %v1740
      %v1780 = vunpack.c.l.b16 %v1741
      %v1781 = vunpack.c.l.b16 %v1742
      %v1782 = vunpack.c.l.b16 %v1743
      %v1783 = vpack.c.b16 %v1768, %v1767
      %v1784 = vpack.c.b16 %v1770, %v1769
      %v1785 = vpack.c.b16 %v1772, %v1771
      %v1786 = vpack.c.b16 %v1774, %v1773
      %v1787 = vpack.c.b16 %v1776, %v1775
      %v1788 = vpack.c.b16 %v1778, %v1777
      %v1789 = vpack.c.b16 %v1780, %v1779
      %v1790 = vpack.c.b16 %v1782, %v1781
      %1799 = vmatprep.subr.bf16.mxu0 0
      %1800 = vmatpush1.bf16.msra.mxu0 %v1783
      %1801 = vmatprep.subr.bf16.mxu0 0
      %1802 = vmatpush1.bf16.msra.mxu0 %v1784
      %1803 = vmatprep.subr.bf16.mxu0 0
      %1804 = vmatpush1.bf16.msra.mxu0 %v1785
      %1805 = vmatprep.subr.bf16.mxu0 0
      %1806 = vmatpush1.bf16.msra.mxu0 %v1786
      %1807 = vmatprep.subr.bf16.mxu0 0
      %1808 = vmatpush1.bf16.msra.mxu0 %v1787
      %1809 = vmatprep.subr.bf16.mxu0 0
      %1810 = vmatpush1.bf16.msra.mxu0 %v1788
      %1811 = vmatprep.subr.bf16.mxu0 0
      %1812 = vmatpush1.bf16.msra.mxu0 %v1789
      %1813 = vmatprep.subr.bf16.mxu0 0
      %1814 = vmatpush1.bf16.msra.mxu0 %v1790
      %1815 = vmatprep.subr.bf16.mxu0 0
      %1816 = vmatpush1.bf16.msra.mxu0 0
      %1817 = vmatprep.subr.bf16.mxu0 0
      %1818 = vmatpush1.bf16.msra.mxu0 0
      %1819 = vmatprep.subr.bf16.mxu0 0
      %1820 = vmatpush1.bf16.msra.mxu0 0
      %1821 = vmatprep.subr.bf16.mxu0 0
      %1822 = vmatpush1.bf16.msra.mxu0 0
      %1823 = vmatprep.subr.bf16.mxu0 0
      %1824 = vmatpush1.bf16.msra.mxu0 0
      %1825 = vmatprep.subr.bf16.mxu0 0
      %1826 = vmatpush1.bf16.msra.mxu0 0
      %1827 = vmatprep.subr.bf16.mxu0 0
      %1828 = vmatpush1.bf16.msra.mxu0 0
      %1829 = vmatprep.subr.bf16.mxu0 0
      %1830 = vmatpush1.bf16.msra.mxu0 0
      %1831 = vmatprep.mubr.bf16.mxu0 0
      %1832 = vmatmul.mubr.bf16.gmra.mrb[0].mxu0 %v1720
      %v1833 = vpop.f32.mrb[0].mxu0
      %v1834 = vadd.f32 %v1749, %v1833
      %v1835 = vpop.f32.mrb[0].mxu0
      %v1836 = vpop.f32.mrb[0].mxu0
      %v1837 = vadd.f32 %v1749, %v1836
      %v1838 = vpop.f32.mrb[0].mxu0
      %1839 = vmatprep.mubr.bf16.mxu0 0
      %1840 = vmatmul.mubr.bf16.gmra.mrb[0].mxu0 %v1721
      %v1841 = vpop.f32.mrb[0].mxu0
      %v1842 = vadd.f32 %v1749, %v1841
      %v1843 = vpop.f32.mrb[0].mxu0
      %v1844 = vpop.f32.mrb[0].mxu0
      %v1845 = vadd.f32 %v1749, %v1844
      %v1846 = vpop.f32.mrb[0].mxu0
      %1847 = vmatprep.mubr.bf16.mxu0 0
      %1848 = vmatmul.mubr.bf16.gmra.mrb[0].mxu0 %v1722
      %v1849 = vpop.f32.mrb[0].mxu0
      %v1850 = vadd.f32 %v1749, %v1849
      %v1851 = vpop.f32.mrb[0].mxu0
      %v1852 = vpop.f32.mrb[0].mxu0
      %v1853 = vadd.f32 %v1749, %v1852
      %v1854 = vpop.f32.mrb[0].mxu0
      %1855 = vmatprep.mubr.bf16.mxu0 0
      %1856 = vmatmul.mubr.bf16.gmra.mrb[0].mxu0 %v1723
      %v1857 = vpop.f32.mrb[0].mxu0
      %v1858 = vadd.f32 %v1749, %v1857
      %v1859 = vpop.f32.mrb[0].mxu0
      %v1860 = vpop.f32.mrb[0].mxu0
      %v1861 = vadd.f32 %v1749, %v1860
      %v1862 = vpop.f32.mrb[0].mxu0
      %1863 = vmatprep.mubr.bf16.mxu0 0
      %1864 = vmatmul.mubr.bf16.gmra.mrb[0].mxu0 %v1724
      %v1865 = vpop.f32.mrb[0].mxu0
      %v1866 = vadd.f32 %v1749, %v1865
      %v1867 = vpop.f32.mrb[0].mxu0
      %v1868 = vpop.f32.mrb[0].mxu0
      %v1869 = vadd.f32 %v1749, %v1868
      %v1870 = vpop.f32.mrb[0].mxu0
      %1871 = vmatprep.mubr.bf16.mxu0 0
      %1872 = vmatmul.mubr.bf16.gmra.mrb[0].mxu0 %v1725
      %v1873 = vpop.f32.mrb[0].mxu0
      %v1874 = vadd.f32 %v1749, %v1873
      %v1875 = vpop.f32.mrb[0].mxu0
      %v1876 = vpop.f32.mrb[0].mxu0
      %v1877 = vadd.f32 %v1749, %v1876
      %v1878 = vpop.f32.mrb[0].mxu0
      %1879 = vmatprep.mubr.bf16.mxu0 0
      %1880 = vmatmul.mubr.bf16.gmra.mrb[0].mxu0 %v1726
      %v1881 = vpop.f32.mrb[0].mxu0
      %v1882 = vadd.f32 %v1749, %v1881
      %v1883 = vpop.f32.mrb[0].mxu0
      %v1884 = vpop.f32.mrb[0].mxu0
      %v1885 = vadd.f32 %v1749, %v1884
      %v1886 = vpop.f32.mrb[0].mxu0
      %1887 = vmatprep.mubr.bf16.mxu0 0
      %1888 = vmatmul.mubr.bf16.gmra.mrb[0].mxu0 %v1727
      %v1889 = vpop.f32.mrb[0].mxu0
      %v1890 = vadd.f32 %v1749, %v1889
      %v1891 = vpop.f32.mrb[0].mxu0
      %v1892 = vpop.f32.mrb[0].mxu0
      %v1893 = vadd.f32 %v1749, %v1892
      %v1894 = vpop.f32.mrb[0].mxu0
      %1895 = vdwg.mxu0
      %vm1896 = vcmask 80896
      %1897 = vst.msk [vmem:[%s337] sm:$0xff] %vm1896, %v1834
      %1898 = vst.msk [vmem:[%s337 + $0x8] sm:$0xff] %vm1896, %v1837
      %1899 = vst.msk [vmem:[%s337 + $0x10] sm:$0xff] %vm1896, %v1842
      %1900 = vst.msk [vmem:[%s337 + $0x18] sm:$0xff] %vm1896, %v1845
      %1901 = vst.msk [vmem:[%s337 + $0x20] sm:$0xff] %vm1896, %v1850
      %1902 = vst.msk [vmem:[%s337 + $0x28] sm:$0xff] %vm1896, %v1853
      %1903 = vst.msk [vmem:[%s337 + $0x30] sm:$0xff] %vm1896, %v1858
      %1904 = vst.msk [vmem:[%s337 + $0x38] sm:$0xff] %vm1896, %v1861
      %1905 = vst.msk [vmem:[%s337 + $0x40] sm:$0xff] %vm1896, %v1866
      %1906 = vst.msk [vmem:[%s337 + $0x48] sm:$0xff] %vm1896, %v1869
      %1907 = vst.msk [vmem:[%s337 + $0x50] sm:$0xff] %vm1896, %v1874
      %1908 = vst.msk [vmem:[%s337 + $0x58] sm:$0xff] %vm1896, %v1877
      %1909 = vst.msk [vmem:[%s337 + $0x60] sm:$0xff] %vm1896, %v1882
      %1910 = vst.msk [vmem:[%s337 + $0x68] sm:$0xff] %vm1896, %v1885
      %1911 = vst.msk [vmem:[%s337 + $0x70] sm:$0xff] %vm1896, %v1890
      %1912 = vst.msk [vmem:[%s337 + $0x78] sm:$0xff] %vm1896, %v1893
      %s1913 = smul.u32 16, %s20
      %p1914 = scmp.lt.s32.totalorder %s1913, 31
      %s1915 = scalar_select %p1914, %s1913, 31
      %s1916 = smul.addr %s1915, 8
      %s1917 = scalar_lea.vmem %s9, %s1916
      // Predicated region
      $region57: #{tpu_custom_call.1} parent=55 // pred_check
        %p1918 = pneg %p232
      $region58: #{tpu_custom_call.1} parent=55 // pred_check_branch
        %1920 = sbr.rel (%p1918) target = $region60
      $region59: #{tpu_custom_call.1} parent=55 // pred_region
        %s1921 = smul.u32 16, %s20
      $region60: #{tpu_custom_call.1} parent=55 // pred_fallthru
        _
    $region56: #{tpu_custom_call.1} parent=5 // pred_fallthru
      _
    %p1922 = scmp.le.s32.totalorder 2, %s15
    // Predicated region
    $region61: #{tpu_custom_call.1} parent=5 // pred_check
      %p1923 = pneg %p1922
    $region62: #{tpu_custom_call.1} parent=5 // pred_check_branch
      %1925 = sbr.rel (%p1923) target = $region64
    $region63: #{tpu_custom_call.1} parent=5 // pred_region
      %s1926 = ssub.s32 %s15, 2
      // Predicated region
      $region65: #{tpu_custom_call.1} parent=63 // pred_check
        %p1927 = pneg %p238
      $region66: #{tpu_custom_call.1} parent=63 // pred_check_branch
        %1929 = sbr.rel (%p1927) target = $region68
      $region67: #{tpu_custom_call.1} parent=63 // pred_region
        %s1930 = smul.u32 16, %s21
        %p1931 = scmp.lt.s32.totalorder %s1930, 31
        %s1932 = scalar_select %p1931, %s1930, 31
        %s1933 = smul.addr %s1932, 8
        %s1934 = scalar_lea.vmem %s9, %s1933
      $region68: #{tpu_custom_call.1} parent=63 // pred_fallthru
        _
    $region64: #{tpu_custom_call.1} parent=5 // pred_fallthru
      _
  $region6: #{tpu_custom_call.1} parent=0 // loop_footer
    %s19 = sadd.s32 1, %s15
  $region7: #{tpu_custom_call.1} parent=0 // loop_footer_branch
    %14 = sbr.rel target = $region3
  $region8: #{tpu_custom_call.1} parent=0 // loop_exit
    _

</llo_original>
